<compile_context>
chip_gen: v5e
topology: v5e:2x2
jax: 0.10.0
libtpu: 0.0.40
codegen_flags: <defaults>
</compile_context>

<pallas_src>
from functools import partial

import jax
import jax.numpy as jnp
from jax.experimental import pallas as pl
from jax.experimental.pallas import tpu as pltpu


# ---------------------------------------------------------------------------
# Host/XLA-side constant transforms (tiny, traced once per shape).
# ---------------------------------------------------------------------------
def _band_conv_matrices(w_hwio, width):
    """(3, 3, Cin, Cout) -> (3, width*Cin, width*Cout) banded matrices.

    mat[ky][w_in*Cin + ci, w_out*Cout + co] == w_hwio[ky, kx, ci, co] with
    kx = w_in - w_out + 1; taps falling outside [0, width) are dropped, which
    reproduces the zero padding of a 'same' 3x3 conv along W.  Lane index is
    channel-minor (w*C + c), so one whole conv row is a single matmul.
    """
    _, _, cin, cout = w_hwio.shape
    w_in = jnp.arange(width)
    w_out = jnp.arange(width)
    mats = []
    for ky in range(3):
        m = jnp.zeros((width, cin, width, cout), w_hwio.dtype)
        for kx in range(3):
            sel = (w_in[:, None] == (w_out[None, :] + kx - 1)).astype(w_hwio.dtype)
            m = m + sel[:, None, :, None] * w_hwio[ky, kx][None, :, None, :]
        mats.append(m.reshape(width * cin, width * cout))
    return jnp.stack(mats)


def _pool_row_select_even(m_rows, mp_rows, dtype=jnp.float32):
    """(mp_rows, m_rows-1) exact 0/1 matrix: (E @ a)[r] == a[2*r]."""
    src = jnp.arange(m_rows - 1)
    dst = jnp.arange(mp_rows)
    return (src[None, :] == 2 * dst[:, None]).astype(dtype)


def _pool_col_select(width, cout, dtype=jnp.float32):
    """((width-1)*cout, width*cout) exact 0/1 lane-compaction matrix.

    Operand lane i already holds max over conv lanes {i, i+cout}; output lane
    j (and its duplicate at j + (width//2)*cout) picks i = 2*(j//cout)*cout +
    j%cout, i.e. the 2x2-pooled value for (wp, c).  The duplicated halves keep
    the pooled store a full 128-lane (unmasked) store.
    """
    wp = width // 2
    n_src = (width - 1) * cout
    n_dst = width * cout
    j = jnp.arange(n_dst)
    jm = j % (wp * cout)
    src_for_j = 2 * (jm // cout) * cout + (jm % cout)
    return (jnp.arange(n_src)[:, None] == src_for_j[None, :]).astype(dtype)


def _pick_batch_tile(n, h, max_rows=256):
    """Images per grid step: fatten the matmul M dim (= nb*h) toward the MXU
    height while keeping >= 2 grid steps when possible (feeds both v7x TCs)."""
    divisors = [d for d in range(1, n + 1) if n % d == 0 and d * h <= max_rows]
    if not divisors:
        return 1
    keep_two = [d for d in divisors if n // d >= 2]
    return max(keep_two) if keep_two else max(divisors)


# ---------------------------------------------------------------------------
# Fused kernel: conv3x3+ReLU -> conv3x3+ReLU -> (optional) 2x2 maxpool.
# One grid step = nb images.  Rows are flattened channel-minor: (H, W*C).
# ---------------------------------------------------------------------------
def _down_conv_kernel(pooling, cout, x_ref, w1_ref, b1_ref, w2_ref, b2_ref, *rest):
    if pooling:
        ersel_ref, csel_ref, before_ref, pool_ref, xp1, xp2 = rest
    else:
        before_ref, xp1, xp2 = rest

    nb, H, wcin = x_ref.shape
    wcout = before_ref.shape[2]
    M = nb * H
    f32 = jnp.float32
    bf16 = jnp.bfloat16

    # ---- conv1 + bias + ReLU ------------------------------------------------
    # pad=1 along H: zero halo rows in the VMEM scratch (re-written every step;
    # a program_id==0 hoist would leave the second core's scratch garbage under
    # megacore "parallel" partitioning).  pad=1 along W is folded into the
    # banded weight matrices.
    zrow1 = jnp.zeros((nb, 1, wcin), bf16)
    xp1[:, 0:1, :] = zrow1
    xp1[:, H + 1:H + 2, :] = zrow1
    xp1[:, 1:H + 1, :] = x_ref[...]
    # (At larger H one would DMA x straight into the scratch interior via
    #  memory_space=pl.ANY to skip this extra VMEM read+write.)

    acc = jnp.zeros((M, wcout), f32)
    for ky in range(3):                       # 3 bf16 MXU matmuls over M = nb*H rows
        lhs = xp1[:, ky:ky + H, :].reshape(M, wcin)
        acc = acc + jnp.dot(lhs, w1_ref[ky], preferred_element_type=f32)
    a1 = jnp.maximum(acc + b1_ref[...], 0.0)  # f32 epilogue

    # ---- conv2 + bias + ReLU (intermediate stays on-chip in VMEM) -----------
    zrow2 = jnp.zeros((nb, 1, wcout), bf16)
    xp2[:, 0:1, :] = zrow2
    xp2[:, H + 1:H + 2, :] = zrow2
    xp2[:, 1:H + 1, :] = a1.astype(bf16).reshape(nb, H, wcout)

    acc = jnp.zeros((M, wcout), f32)
    for ky in range(3):
        lhs = xp2[:, ky:ky + H, :].reshape(M, wcout)
        acc = acc + jnp.dot(lhs, w2_ref[ky], preferred_element_type=f32)
    a2 = jnp.maximum(acc + b2_ref[...], 0.0)  # (M, W*Cout) f32, lane-dense (128)

    before_ref[...] = a2.reshape(nb, H, wcout).astype(before_ref.dtype)

    # ---- fused 2x2 stride-2 maxpool ------------------------------------------
    if pooling:
        Hp = H // 2
        # Rows: pairwise VPU max of adjacent rows, then ONE exact 0/1 selection
        # matmul compacts to the even rows (pairs never cross image boundaries
        # because H is even).
        rm = jnp.maximum(a2[:M - 1, :], a2[1:, :])                     # (M-1, wcout)
        rp = jnp.dot(ersel_ref[...], rm, preferred_element_type=f32)   # (nb*Hp, wcout)
        # Columns: pairwise VPU max of lanes j / j+Cout, then ONE exact 0/1
        # selection matmul compacts + duplicates into wcout = 128 lanes so the
        # store is a full unmasked vst.  All pool math is f32/exact, so pooled
        # is the exact 2x2 max of before_pool.
        cm = jnp.maximum(rp[:, :wcout - cout], rp[:, cout:])           # (nb*Hp, wcout-cout)
        pooled = jnp.dot(cm, csel_ref[...], preferred_element_type=f32)
        pool_ref[...] = pooled.reshape(nb, Hp, wcout).astype(pool_ref.dtype)


@partial(jax.jit, static_argnames=("pooling",))
def down_conv_forward(x_nchw, w1, b1, w2, b2, *, pooling=True):
    N, Cin, H, W = x_nchw.shape
    Cout = w1.shape[-1]
    assert H % 2 == 0 and W % 2 == 0
    Hp, Wp = H // 2, W // 2
    WCin, WCout = W * Cin, W * Cout

    nb = _pick_batch_tile(N, H)
    M, Mp = nb * H, nb * Hp

    # Layout plumbing only (kept for the PyTorch NCHW interface): one fused XLA
    # copy to channel-minor lane-dense rows (h, w*Cin + ci), cast to bf16
    # (MXU-native on v5e/v6e/v7x; halves the input DMA).
    x_rows = jnp.transpose(x_nchw, (0, 2, 3, 1)).reshape(N, H, WCin)
    x_rows = x_rows.astype(jnp.bfloat16)

    w1m = _band_conv_matrices(w1, W).astype(jnp.bfloat16)    # (3, W*Cin,  W*Cout)
    w2m = _band_conv_matrices(w2, W).astype(jnp.bfloat16)    # (3, W*Cout, W*Cout)
    b1r = jnp.tile(b1, W)[None, :]                           # (1, W*Cout) f32
    b2r = jnp.tile(b2, W)[None, :]                           # (1, W*Cout) f32

    # Constant-block-index inputs: single-buffered (double-buffering a block
    # whose index_map never changes only doubles its VMEM footprint).
    const = pl.Buffered(1)

    in_arrays = [x_rows, w1m, b1r, w2m, b2r]
    in_specs = [
        pl.BlockSpec((nb, H, WCin), lambda n: (n, 0, 0)),
        pl.BlockSpec((3, WCin, WCout), lambda n: (0, 0, 0), pipeline_mode=const),
        pl.BlockSpec((1, WCout), lambda n: (0, 0), pipeline_mode=const),
        pl.BlockSpec((3, WCout, WCout), lambda n: (0, 0, 0), pipeline_mode=const),
        pl.BlockSpec((1, WCout), lambda n: (0, 0), pipeline_mode=const),
    ]
    out_shape = [jax.ShapeDtypeStruct((N, H, WCout), jnp.float32)]
    out_specs = [pl.BlockSpec((nb, H, WCout), lambda n: (n, 0, 0))]

    if pooling:
        ersel = _pool_row_select_even(M, Mp)                 # (Mp, M-1) f32
        csel = _pool_col_select(W, Cout)                     # ((W-1)*Cout, W*Cout)
        in_arrays += [ersel, csel]
        in_specs += [
            pl.BlockSpec((Mp, M - 1), lambda n: (0, 0), pipeline_mode=const),
            pl.BlockSpec(((W - 1) * Cout, WCout), lambda n: (0, 0), pipeline_mode=const),
        ]
        out_shape.append(jax.ShapeDtypeStruct((N, Hp, WCout), jnp.float32))
        out_specs.append(pl.BlockSpec((nb, Hp, WCout), lambda n: (n, 0, 0)))

    outs = pl.pallas_call(
        partial(_down_conv_kernel, pooling, Cout),
        out_shape=tuple(out_shape),
        grid=(N // nb,),
        in_specs=in_specs,
        out_specs=tuple(out_specs),
        scratch_shapes=[
            pltpu.VMEM((nb, H + 2, WCin), jnp.bfloat16),     # conv1 input + H halo
            pltpu.VMEM((nb, H + 2, WCout), jnp.bfloat16),    # conv1 output + H halo
        ],
        compiler_params=pltpu.CompilerParams(
            dimension_semantics=("parallel",),
            # No vmem_limit override: 32 MiB scoped default is ample here and a
            # 64 MiB request equals v7x's entire physical VMEM per TensorCore.
        ),
    )(*in_arrays)

    if pooling:
        before_rows, pooled_rows = outs
    else:
        (before_rows,) = outs

    before_pool = jnp.transpose(before_rows.reshape(N, H, W, Cout), (0, 3, 1, 2))
    if pooling:
        pooled_rows = pooled_rows[..., :Wp * Cout]           # drop duplicated lanes
        pooled = jnp.transpose(pooled_rows.reshape(N, Hp, Wp, Cout), (0, 3, 1, 2))
    else:
        pooled = before_pool
    return pooled, before_pool


# ---------------------------------------------------------------------------
# DownConv module (parameters created deterministically in-script).
# Weights stored as (3, 3, Cin, Cout) == HWIO (PyTorch stores OIHW; same math).
# ---------------------------------------------------------------------------
class DownConvPallas:
    def __init__(self, in_channels, out_channels, pooling=True, key=None):
        self.pooling = pooling
        key = jax.random.PRNGKey(42) if key is None else key
        k1, k2, k3, k4 = jax.random.split(key, 4)
        s1 = 1.0 / (in_channels * 9) ** 0.5
        s2 = 1.0 / (out_channels * 9) ** 0.5
        self.w1 = jax.random.uniform(k1, (3, 3, in_channels, out_channels),
                                     jnp.float32, -s1, s1)
        self.b1 = jax.random.uniform(k2, (out_channels,), jnp.float32, -s1, s1)
        self.w2 = jax.random.uniform(k3, (3, 3, out_channels, out_channels),
                                     jnp.float32, -s2, s2)
        self.b2 = jax.random.uniform(k4, (out_channels,), jnp.float32, -s2, s2)

    def __call__(self, x_nchw):
        return down_conv_forward(x_nchw, self.w1, self.b1, self.w2, self.b2,
                                 pooling=self.pooling)


# ---------------------------------------------------------------------------
# Reference (pure JAX, f32) for a sanity check.
# ---------------------------------------------------------------------------
def _ref_forward(x_nchw, mod):
    x = jnp.transpose(x_nchw, (0, 2, 3, 1))
    dn = jax.lax.conv_dimension_numbers(x.shape, mod.w1.shape,
                                        ("NHWC", "HWIO", "NHWC"))
    x = jax.lax.conv_general_dilated(x, mod.w1, (1, 1), "SAME",
                                     dimension_numbers=dn) + mod.b1
    x = jnp.maximum(x, 0.0)
    x = jax.lax.conv_general_dilated(x, mod.w2, (1, 1), "SAME",
                                     dimension_numbers=dn) + mod.b2
    x = jnp.maximum(x, 0.0)
    before = x
    pooled = jax.lax.reduce_window(x, -jnp.inf, jax.lax.max,
                                   (1, 2, 2, 1), (1, 2, 2, 1), "VALID")
    return (jnp.transpose(pooled, (0, 3, 1, 2)),
            jnp.transpose(before, (0, 3, 1, 2)))


if __name__ == "__main__":
    in_channels, out_channels = 4, 8
    N, H, W = 4, 16, 16   # N=4 -> nb=2 images per grid step, grid length 2

    x = jax.random.normal(jax.random.PRNGKey(0), (N, in_channels, H, W),
                          dtype=jnp.float32)

    # bf16 matmul operands (f32 accumulate) -> loosened tolerances vs f32 ref.
    ATOL = RTOL = 2e-2

    # Pooling path.
    mod = DownConvPallas(in_channels, out_channels, pooling=True,
                         key=jax.random.PRNGKey(1))
    pooled, before_pool = mod(x)
    pooled = jax.block_until_ready(pooled)
    before_pool = jax.block_until_ready(before_pool)

    assert pooled.shape == (N, out_channels, H // 2, W // 2)
    assert before_pool.shape == (N, out_channels, H, W)

    ref_pooled, ref_before = _ref_forward(x, mod)
    assert jnp.allclose(before_pool, ref_before, atol=ATOL, rtol=RTOL)
    assert jnp.allclose(pooled, ref_pooled, atol=ATOL, rtol=RTOL)

    # No-pooling path (same weights).
    mod_np = DownConvPallas(in_channels, out_channels, pooling=False,
                            key=jax.random.PRNGKey(1))
    np_out, np_before = mod_np(x)
    np_out = jax.block_until_ready(np_out)
    assert np_out.shape == (N, out_channels, H, W)
    assert jnp.allclose(np_before, ref_before, atol=ATOL, rtol=RTOL)
    assert jnp.allclose(np_out, np_before)

    print("KERNEL_OK")
</pallas_src>

<mosaic_0001>
module attributes {stable_mosaic.version = 11 : i64} {
  func.func @_down_conv_kernel(%arg0: i32, %arg1: memref<2x16x64xbf16, #tpu.memory_space<vmem>>, %arg2: memref<3x64x128xbf16, #tpu.memory_space<vmem>>, %arg3: memref<1x128xf32, #tpu.memory_space<vmem>>, %arg4: memref<3x128x128xbf16, #tpu.memory_space<vmem>>, %arg5: memref<1x128xf32, #tpu.memory_space<vmem>>, %arg6: memref<16x31xf32, #tpu.memory_space<vmem>>, %arg7: memref<120x128xf32, #tpu.memory_space<vmem>>, %arg8: memref<2x16x128xf32, #tpu.memory_space<vmem>>, %arg9: memref<2x8x128xf32, #tpu.memory_space<vmem>>, %arg10: memref<2x18x64xbf16, #tpu.memory_space<vmem>>, %arg11: memref<2x18x128xbf16, #tpu.memory_space<vmem>>) attributes {dimension_semantics = [#tpu.dimension_semantics<parallel>], iteration_bounds = array<i64: 2>, scalar_prefetch = 0 : i64, scratch_operands = 2 : i64, tpu.core_type = #tpu.core_type<tc>, window_params = [{transform_indices = @transform_0, window_bounds = array<i64: 2, 16, 64>}, {pipeline_mode = #tpu.pipeline_mode<synchronous>, transform_indices = @transform_1, window_bounds = array<i64: 3, 64, 128>}, {pipeline_mode = #tpu.pipeline_mode<synchronous>, transform_indices = @transform_2, window_bounds = array<i64: 1, 128>}, {pipeline_mode = #tpu.pipeline_mode<synchronous>, transform_indices = @transform_3, window_bounds = array<i64: 3, 128, 128>}, {pipeline_mode = #tpu.pipeline_mode<synchronous>, transform_indices = @transform_4, window_bounds = array<i64: 1, 128>}, {pipeline_mode = #tpu.pipeline_mode<synchronous>, transform_indices = @transform_5, window_bounds = array<i64: 16, 31>}, {pipeline_mode = #tpu.pipeline_mode<synchronous>, transform_indices = @transform_6, window_bounds = array<i64: 120, 128>}, {transform_indices = @transform_7, window_bounds = array<i64: 2, 16, 128>}, {transform_indices = @transform_8, window_bounds = array<i64: 2, 8, 128>}]} {
    %cst = arith.constant 0.000000e+00 : bf16
    %0 = vector.broadcast %cst : bf16 to vector<2x1x64xbf16>
    %c0 = arith.constant 0 : index
    %c0_0 = arith.constant 0 : index
    %c0_1 = arith.constant 0 : index
    %1 = vector.load %arg10[%c0, %c0_0, %c0_1] : memref<2x18x64xbf16, #tpu.memory_space<vmem>>, vector<2x1x64xbf16>
    tpu.vector_store %arg10[%c0, %c0_0, %c0_1], %0 {strides = array<i32>} : memref<2x18x64xbf16, #tpu.memory_space<vmem>>, vector<2x1x64xbf16>,
    %c0_2 = arith.constant 0 : index
    %c17 = arith.constant 17 : index
    %c0_3 = arith.constant 0 : index
    %2 = vector.load %arg10[%c0_2, %c17, %c0_3] : memref<2x18x64xbf16, #tpu.memory_space<vmem>>, vector<2x1x64xbf16>
    tpu.vector_store %arg10[%c0_2, %c17, %c0_3], %0 {strides = array<i32>} : memref<2x18x64xbf16, #tpu.memory_space<vmem>>, vector<2x1x64xbf16>,
    %c0_4 = arith.constant 0 : index
    %c0_5 = arith.constant 0 : index
    %c0_6 = arith.constant 0 : index
    %3 = vector.load %arg1[%c0_4, %c0_5, %c0_6] : memref<2x16x64xbf16, #tpu.memory_space<vmem>>, vector<2x16x64xbf16>
    %c0_7 = arith.constant 0 : index
    %c1 = arith.constant 1 : index
    %c0_8 = arith.constant 0 : index
    %4 = vector.load %arg10[%c0_7, %c1, %c0_8] : memref<2x18x64xbf16, #tpu.memory_space<vmem>>, vector<2x16x64xbf16>
    tpu.vector_store %arg10[%c0_7, %c1, %c0_8], %3 {strides = array<i32>} : memref<2x18x64xbf16, #tpu.memory_space<vmem>>, vector<2x16x64xbf16>,
    %cst_9 = arith.constant 0.000000e+00 : f32
    %5 = vector.broadcast %cst_9 : f32 to vector<32x128xf32>
    %c0_10 = arith.constant 0 : index
    %c0_11 = arith.constant 0 : index
    %c0_12 = arith.constant 0 : index
    %6 = vector.load %arg10[%c0_10, %c0_11, %c0_12] : memref<2x18x64xbf16, #tpu.memory_space<vmem>>, vector<2x16x64xbf16>
    %7 = vector.shape_cast %6 : vector<2x16x64xbf16> to vector<32x64xbf16>
    %c0_13 = arith.constant 0 : index
    %c0_14 = arith.constant 0 : index
    %c0_15 = arith.constant 0 : index
    %8 = vector.load %arg2[%c0_13, %c0_14, %c0_15] : memref<3x64x128xbf16, #tpu.memory_space<vmem>>, vector<1x64x128xbf16>
    %9 = vector.shape_cast %8 : vector<1x64x128xbf16> to vector<64x128xbf16>
    %cst_16 = arith.constant dense<0.000000e+00> : vector<32x128xf32>
    %10 = tpu.matmul %7, %9, %cst_16 {dimension_numbers = #tpu.dot_dimension_numbers<[1], [0], [0], [1], [0, 0, 1, 1], [], []>} : vector<32x64xbf16>, vector<64x128xbf16>, vector<32x128xf32> -> vector<32x128xf32>
    %11 = arith.addf %5, %10 : vector<32x128xf32>
    %c0_17 = arith.constant 0 : index
    %c1_18 = arith.constant 1 : index
    %c0_19 = arith.constant 0 : index
    %12 = vector.load %arg10[%c0_17, %c1_18, %c0_19] : memref<2x18x64xbf16, #tpu.memory_space<vmem>>, vector<2x16x64xbf16>
    %13 = vector.shape_cast %12 : vector<2x16x64xbf16> to vector<32x64xbf16>
    %c1_20 = arith.constant 1 : index
    %c0_21 = arith.constant 0 : index
    %c0_22 = arith.constant 0 : index
    %14 = vector.load %arg2[%c1_20, %c0_21, %c0_22] : memref<3x64x128xbf16, #tpu.memory_space<vmem>>, vector<1x64x128xbf16>
    %15 = vector.shape_cast %14 : vector<1x64x128xbf16> to vector<64x128xbf16>
    %cst_23 = arith.constant dense<0.000000e+00> : vector<32x128xf32>
    %16 = tpu.matmul %13, %15, %cst_23 {dimension_numbers = #tpu.dot_dimension_numbers<[1], [0], [0], [1], [0, 0, 1, 1], [], []>} : vector<32x64xbf16>, vector<64x128xbf16>, vector<32x128xf32> -> vector<32x128xf32>
    %17 = arith.addf %11, %16 : vector<32x128xf32>
    %c0_24 = arith.constant 0 : index
    %c2 = arith.constant 2 : index
    %c0_25 = arith.constant 0 : index
    %18 = vector.load %arg10[%c0_24, %c2, %c0_25] : memref<2x18x64xbf16, #tpu.memory_space<vmem>>, vector<2x16x64xbf16>
    %19 = vector.shape_cast %18 : vector<2x16x64xbf16> to vector<32x64xbf16>
    %c2_26 = arith.constant 2 : index
    %c0_27 = arith.constant 0 : index
    %c0_28 = arith.constant 0 : index
    %20 = vector.load %arg2[%c2_26, %c0_27, %c0_28] : memref<3x64x128xbf16, #tpu.memory_space<vmem>>, vector<1x64x128xbf16>
    %21 = vector.shape_cast %20 : vector<1x64x128xbf16> to vector<64x128xbf16>
    %cst_29 = arith.constant dense<0.000000e+00> : vector<32x128xf32>
    %22 = tpu.matmul %19, %21, %cst_29 {dimension_numbers = #tpu.dot_dimension_numbers<[1], [0], [0], [1], [0, 0, 1, 1], [], []>} : vector<32x64xbf16>, vector<64x128xbf16>, vector<32x128xf32> -> vector<32x128xf32>
    %23 = arith.addf %17, %22 : vector<32x128xf32>
    %c0_30 = arith.constant 0 : index
    %c0_31 = arith.constant 0 : index
    %24 = vector.load %arg3[%c0_30, %c0_31] : memref<1x128xf32, #tpu.memory_space<vmem>>, vector<1x128xf32>
    %25 = vector.broadcast %24 : vector<1x128xf32> to vector<32x128xf32>
    %26 = arith.addf %23, %25 : vector<32x128xf32>
    %cst_32 = arith.constant 0.000000e+00 : f32
    %27 = vector.broadcast %cst_32 : f32 to vector<32x128xf32>
    %28 = arith.maximumf %26, %27 : vector<32x128xf32>
    %cst_33 = arith.constant 0.000000e+00 : bf16
    %29 = vector.broadcast %cst_33 : bf16 to vector<2x1x128xbf16>
    %c0_34 = arith.constant 0 : index
    %c0_35 = arith.constant 0 : index
    %c0_36 = arith.constant 0 : index
    %30 = vector.load %arg11[%c0_34, %c0_35, %c0_36] : memref<2x18x128xbf16, #tpu.memory_space<vmem>>, vector<2x1x128xbf16>
    tpu.vector_store %arg11[%c0_34, %c0_35, %c0_36], %29 {strides = array<i32>} : memref<2x18x128xbf16, #tpu.memory_space<vmem>>, vector<2x1x128xbf16>,
    %c0_37 = arith.constant 0 : index
    %c17_38 = arith.constant 17 : index
    %c0_39 = arith.constant 0 : index
    %31 = vector.load %arg11[%c0_37, %c17_38, %c0_39] : memref<2x18x128xbf16, #tpu.memory_space<vmem>>, vector<2x1x128xbf16>
    tpu.vector_store %arg11[%c0_37, %c17_38, %c0_39], %29 {strides = array<i32>} : memref<2x18x128xbf16, #tpu.memory_space<vmem>>, vector<2x1x128xbf16>,
    %32 = arith.truncf %28 : vector<32x128xf32> to vector<32x128xbf16>
    %33 = vector.shape_cast %32 : vector<32x128xbf16> to vector<2x16x128xbf16>
    %c0_40 = arith.constant 0 : index
    %c1_41 = arith.constant 1 : index
    %c0_42 = arith.constant 0 : index
    %34 = vector.load %arg11[%c0_40, %c1_41, %c0_42] : memref<2x18x128xbf16, #tpu.memory_space<vmem>>, vector<2x16x128xbf16>
    tpu.vector_store %arg11[%c0_40, %c1_41, %c0_42], %33 {strides = array<i32>} : memref<2x18x128xbf16, #tpu.memory_space<vmem>>, vector<2x16x128xbf16>,
    %cst_43 = arith.constant 0.000000e+00 : f32
    %35 = vector.broadcast %cst_43 : f32 to vector<32x128xf32>
    %c0_44 = arith.constant 0 : index
    %c0_45 = arith.constant 0 : index
    %c0_46 = arith.constant 0 : index
    %36 = vector.load %arg11[%c0_44, %c0_45, %c0_46] : memref<2x18x128xbf16, #tpu.memory_space<vmem>>, vector<2x16x128xbf16>
    %37 = vector.shape_cast %36 : vector<2x16x128xbf16> to vector<32x128xbf16>
    %c0_47 = arith.constant 0 : index
    %c0_48 = arith.constant 0 : index
    %c0_49 = arith.constant 0 : index
    %38 = vector.load %arg4[%c0_47, %c0_48, %c0_49] : memref<3x128x128xbf16, #tpu.memory_space<vmem>>, vector<1x128x128xbf16>
    %39 = vector.shape_cast %38 : vector<1x128x128xbf16> to vector<128x128xbf16>
    %cst_50 = arith.constant dense<0.000000e+00> : vector<32x128xf32>
    %40 = tpu.matmul %37, %39, %cst_50 {dimension_numbers = #tpu.dot_dimension_numbers<[1], [0], [0], [1], [0, 0, 1, 1], [], []>} : vector<32x128xbf16>, vector<128x128xbf16>, vector<32x128xf32> -> vector<32x128xf32>
    %41 = arith.addf %35, %40 : vector<32x128xf32>
    %c0_51 = arith.constant 0 : index
    %c1_52 = arith.constant 1 : index
    %c0_53 = arith.constant 0 : index
    %42 = vector.load %arg11[%c0_51, %c1_52, %c0_53] : memref<2x18x128xbf16, #tpu.memory_space<vmem>>, vector<2x16x128xbf16>
    %43 = vector.shape_cast %42 : vector<2x16x128xbf16> to vector<32x128xbf16>
    %c1_54 = arith.constant 1 : index
    %c0_55 = arith.constant 0 : index
    %c0_56 = arith.constant 0 : index
    %44 = vector.load %arg4[%c1_54, %c0_55, %c0_56] : memref<3x128x128xbf16, #tpu.memory_space<vmem>>, vector<1x128x128xbf16>
    %45 = vector.shape_cast %44 : vector<1x128x128xbf16> to vector<128x128xbf16>
    %cst_57 = arith.constant dense<0.000000e+00> : vector<32x128xf32>
    %46 = tpu.matmul %43, %45, %cst_57 {dimension_numbers = #tpu.dot_dimension_numbers<[1], [0], [0], [1], [0, 0, 1, 1], [], []>} : vector<32x128xbf16>, vector<128x128xbf16>, vector<32x128xf32> -> vector<32x128xf32>
    %47 = arith.addf %41, %46 : vector<32x128xf32>
    %c0_58 = arith.constant 0 : index
    %c2_59 = arith.constant 2 : index
    %c0_60 = arith.constant 0 : index
    %48 = vector.load %arg11[%c0_58, %c2_59, %c0_60] : memref<2x18x128xbf16, #tpu.memory_space<vmem>>, vector<2x16x128xbf16>
    %49 = vector.shape_cast %48 : vector<2x16x128xbf16> to vector<32x128xbf16>
    %c2_61 = arith.constant 2 : index
    %c0_62 = arith.constant 0 : index
    %c0_63 = arith.constant 0 : index
    %50 = vector.load %arg4[%c2_61, %c0_62, %c0_63] : memref<3x128x128xbf16, #tpu.memory_space<vmem>>, vector<1x128x128xbf16>
    %51 = vector.shape_cast %50 : vector<1x128x128xbf16> to vector<128x128xbf16>
    %cst_64 = arith.constant dense<0.000000e+00> : vector<32x128xf32>
    %52 = tpu.matmul %49, %51, %cst_64 {dimension_numbers = #tpu.dot_dimension_numbers<[1], [0], [0], [1], [0, 0, 1, 1], [], []>} : vector<32x128xbf16>, vector<128x128xbf16>, vector<32x128xf32> -> vector<32x128xf32>
    %53 = arith.addf %47, %52 : vector<32x128xf32>
    %c0_65 = arith.constant 0 : index
    %c0_66 = arith.constant 0 : index
    %54 = vector.load %arg5[%c0_65, %c0_66] : memref<1x128xf32, #tpu.memory_space<vmem>>, vector<1x128xf32>
    %55 = vector.broadcast %54 : vector<1x128xf32> to vector<32x128xf32>
    %56 = arith.addf %53, %55 : vector<32x128xf32>
    %cst_67 = arith.constant 0.000000e+00 : f32
    %57 = vector.broadcast %cst_67 : f32 to vector<32x128xf32>
    %58 = arith.maximumf %56, %57 : vector<32x128xf32>
    %59 = vector.shape_cast %58 : vector<32x128xf32> to vector<2x16x128xf32>
    %c0_68 = arith.constant 0 : index
    %c0_69 = arith.constant 0 : index
    %c0_70 = arith.constant 0 : index
    %60 = vector.load %arg8[%c0_68, %c0_69, %c0_70] : memref<2x16x128xf32, #tpu.memory_space<vmem>>, vector<2x16x128xf32>
    tpu.vector_store %arg8[%c0_68, %c0_69, %c0_70], %59 {strides = array<i32>} : memref<2x16x128xf32, #tpu.memory_space<vmem>>, vector<2x16x128xf32>,
    %61 = vector.extract_strided_slice %58 {offsets = [0, 0], sizes = [31, 128], strides = [1, 1]} : vector<32x128xf32> to vector<31x128xf32>
    %62 = vector.extract_strided_slice %58 {offsets = [1, 0], sizes = [31, 128], strides = [1, 1]} : vector<32x128xf32> to vector<31x128xf32>
    %63 = arith.maximumf %61, %62 : vector<31x128xf32>
    %c0_71 = arith.constant 0 : index
    %c0_72 = arith.constant 0 : index
    %64 = vector.load %arg6[%c0_71, %c0_72] : memref<16x31xf32, #tpu.memory_space<vmem>>, vector<16x31xf32>
    %cst_73 = arith.constant dense<0.000000e+00> : vector<16x128xf32>
    %65 = tpu.matmul %64, %63, %cst_73 {dimension_numbers = #tpu.dot_dimension_numbers<[1], [0], [0], [1], [0, 0, 1, 1], [], []>} : vector<16x31xf32>, vector<31x128xf32>, vector<16x128xf32> -> vector<16x128xf32>
    %66 = vector.extract_strided_slice %65 {offsets = [0, 0], sizes = [16, 120], strides = [1, 1]} : vector<16x128xf32> to vector<16x120xf32>
    %67 = vector.extract_strided_slice %65 {offsets = [0, 8], sizes = [16, 120], strides = [1, 1]} : vector<16x128xf32> to vector<16x120xf32>
    %68 = arith.maximumf %66, %67 : vector<16x120xf32>
    %c0_74 = arith.constant 0 : index
    %c0_75 = arith.constant 0 : index
    %69 = vector.load %arg7[%c0_74, %c0_75] : memref<120x128xf32, #tpu.memory_space<vmem>>, vector<120x128xf32>
    %cst_76 = arith.constant dense<0.000000e+00> : vector<16x128xf32>
    %70 = tpu.matmul %68, %69, %cst_76 {dimension_numbers = #tpu.dot_dimension_numbers<[1], [0], [0], [1], [0, 0, 1, 1], [], []>} : vector<16x120xf32>, vector<120x128xf32>, vector<16x128xf32> -> vector<16x128xf32>
    %71 = vector.shape_cast %70 : vector<16x128xf32> to vector<2x8x128xf32>
    %c0_77 = arith.constant 0 : index
    %c0_78 = arith.constant 0 : index
    %c0_79 = arith.constant 0 : index
    %72 = vector.load %arg9[%c0_77, %c0_78, %c0_79] : memref<2x8x128xf32, #tpu.memory_space<vmem>>, vector<2x8x128xf32>
    tpu.vector_store %arg9[%c0_77, %c0_78, %c0_79], %71 {strides = array<i32>} : memref<2x8x128xf32, #tpu.memory_space<vmem>>, vector<2x8x128xf32>,
    return
  }
  func.func @transform_0(%arg0: i32) -> (i32, i32, i32) {
    %c0_i32 = arith.constant 0 : i32
    %c0_i32_0 = arith.constant 0 : i32
    %c0_i32_1 = arith.constant 0 : i32
    return %arg0, %c0_i32, %c0_i32_0 : i32, i32, i32
  }
  func.func @transform_1(%arg0: i32) -> (i32, i32, i32) {
    %c0_i32 = arith.constant 0 : i32
    %c0_i32_0 = arith.constant 0 : i32
    %c0_i32_1 = arith.constant 0 : i32
    %c0_i32_2 = arith.constant 0 : i32
    return %c0_i32, %c0_i32_0, %c0_i32_1 : i32, i32, i32
  }
  func.func @transform_2(%arg0: i32) -> (i32, i32) {
    %c0_i32 = arith.constant 0 : i32
    %c0_i32_0 = arith.constant 0 : i32
    %c0_i32_1 = arith.constant 0 : i32
    return %c0_i32, %c0_i32_0 : i32, i32
  }
  func.func @transform_3(%arg0: i32) -> (i32, i32, i32) {
    %c0_i32 = arith.constant 0 : i32
    %c0_i32_0 = arith.constant 0 : i32
    %c0_i32_1 = arith.constant 0 : i32
    %c0_i32_2 = arith.constant 0 : i32
    return %c0_i32, %c0_i32_0, %c0_i32_1 : i32, i32, i32
  }
  func.func @transform_4(%arg0: i32) -> (i32, i32) {
    %c0_i32 = arith.constant 0 : i32
    %c0_i32_0 = arith.constant 0 : i32
    %c0_i32_1 = arith.constant 0 : i32
    return %c0_i32, %c0_i32_0 : i32, i32
  }
  func.func @transform_5(%arg0: i32) -> (i32, i32) {
    %c0_i32 = arith.constant 0 : i32
    %c0_i32_0 = arith.constant 0 : i32
    %c0_i32_1 = arith.constant 0 : i32
    return %c0_i32, %c0_i32_0 : i32, i32
  }
  func.func @transform_6(%arg0: i32) -> (i32, i32) {
    %c0_i32 = arith.constant 0 : i32
    %c0_i32_0 = arith.constant 0 : i32
    %c0_i32_1 = arith.constant 0 : i32
    return %c0_i32, %c0_i32_0 : i32, i32
  }
  func.func @transform_7(%arg0: i32) -> (i32, i32, i32) {
    %c0_i32 = arith.constant 0 : i32
    %c0_i32_0 = arith.constant 0 : i32
    %c0_i32_1 = arith.constant 0 : i32
    return %arg0, %c0_i32, %c0_i32_0 : i32, i32, i32
  }
  func.func @transform_8(%arg0: i32) -> (i32, i32, i32) {
    %c0_i32 = arith.constant 0 : i32
    %c0_i32_0 = arith.constant 0 : i32
    %c0_i32_1 = arith.constant 0 : i32
    return %arg0, %c0_i32, %c0_i32_0 : i32, i32, i32
  }
}

</mosaic_0001>

<llo_original>
// kernel: tile.13
$region0: #{tile.13}
  #allocation0 [shape = 's32[1]{0}', space=sflag, size = 0x4, scoped, tag = 'scoped memory for tile.13']
  %s0 = inlined_call_operand.vmem [shape: f32[8], index: 0, kind: input, shape index: {}]
  %s1 = inlined_call_operand.vmem [shape: f32[16,8], index: 1, kind: output, shape index: {}]
  // Predicated region
  $region2: #{tile.13} parent=0 // pred_check
    _
  $region3: #{tile.13} parent=0 // pred_check_branch
    %3 = sbr.rel (0) target = $region5
  $region4: #{tile.13} parent=0 // pred_region
    _
  $region5: #{tile.13} parent=0 // pred_fallthru
    _
  %v4 = vld [vmem:[%s0] ss:$0 sm:$0xff]
  %5 = vst [vmem:[%s1] sm:$0xff] %v4
  %s6 = scalar_lea.vmem %s1, 8
  %7 = vst [vmem:[%s6] sm:$0xff] %v4

// kernel: tile.14
$region0: #{tile.14}
  %s0 = inlined_call_operand.vmem [shape: f32[16,8], index: 0, kind: input, shape index: {}]
  %s1 = inlined_call_operand.vmem [shape: f32[1,128], index: 1, kind: output, shape index: {}]
  $region1: #{tile.14} parent=0
    #allocation0 [shape = 'u8[4096]{0}', space=vmem, size = 0x1000, scoped, tag = 'scoped mem for output reshape']
    %v2 = vld [vmem:[%s0] sm:$0x1]
    %vm3 = vcmask 64512
    %4 = vst.msk [vmem:[#allocation0] sm:$0x1] %vm3, %v2
    %s5 = scalar_lea.vmem %s0, 15
    %v6 = vld [vmem:[%s5] sm:$0x1]
    %7 = vrot.lane.b32.xlu0 %v6, 120
    %v8 = vpop.permute.xlu0 %7
    %vm9 = vcmask 1048512
    %10 = vst.msk [vmem:[#allocation0] sm:$0x1] %vm9, %v8
    %s11 = scalar_lea.vmem %s0, 14
    %v12 = vld [vmem:[%s11] sm:$0x1]
    %13 = vrot.lane.b32.xlu0 %v12, 112
    %v14 = vpop.permute.xlu0 %13
    %vm15 = vcmask 982912
    %16 = vst.msk [vmem:[#allocation0] sm:$0x1] %vm15, %v14
    %s17 = scalar_lea.vmem %s0, 13
    %v18 = vld [vmem:[%s17] sm:$0x1]
    %19 = vrot.lane.b32.xlu0 %v18, 104
    %v20 = vpop.permute.xlu0 %19
    %vm21 = vcmask 917312
    %22 = vst.msk [vmem:[#allocation0] sm:$0x1] %vm21, %v20
    %s23 = scalar_lea.vmem %s0, 12
    %v24 = vld [vmem:[%s23] sm:$0x1]
    %25 = vrot.lane.b32.xlu0 %v24, 96
    %v26 = vpop.permute.xlu0 %25
    %vm27 = vcmask 851712
    %28 = vst.msk [vmem:[#allocation0] sm:$0x1] %vm27, %v26
    %s29 = scalar_lea.vmem %s0, 11
    %v30 = vld [vmem:[%s29] sm:$0x1]
    %31 = vrot.lane.b32.xlu0 %v30, 88
    %v32 = vpop.permute.xlu0 %31
    %vm33 = vcmask 786112
    %34 = vst.msk [vmem:[#allocation0] sm:$0x1] %vm33, %v32
    %s35 = scalar_lea.vmem %s0, 10
    %v36 = vld [vmem:[%s35] sm:$0x1]
    %37 = vrot.lane.b32.xlu0 %v36, 80
    %v38 = vpop.permute.xlu0 %37
    %vm39 = vcmask 720512
    %40 = vst.msk [vmem:[#allocation0] sm:$0x1] %vm39, %v38
    %s41 = scalar_lea.vmem %s0, 9
    %v42 = vld [vmem:[%s41] sm:$0x1]
    %43 = vrot.lane.b32.xlu0 %v42, 72
    %v44 = vpop.permute.xlu0 %43
    %vm45 = vcmask 654912
    %46 = vst.msk [vmem:[#allocation0] sm:$0x1] %vm45, %v44
    %s47 = scalar_lea.vmem %s0, 8
    %v48 = vld [vmem:[%s47] sm:$0x1]
    %49 = vrot.lane.b32.xlu0 %v48, 64
    %v50 = vpop.permute.xlu0 %49
    %vm51 = vcmask 589312
    %52 = vst.msk [vmem:[#allocation0] sm:$0x1] %vm51, %v50
    %s53 = scalar_lea.vmem %s0, 7
    %v54 = vld [vmem:[%s53] sm:$0x1]
    %55 = vrot.lane.b32.xlu0 %v54, 56
    %v56 = vpop.permute.xlu0 %55
    %vm57 = vcmask 523712
    %58 = vst.msk [vmem:[#allocation0] sm:$0x1] %vm57, %v56
    %s59 = scalar_lea.vmem %s0, 6
    %v60 = vld [vmem:[%s59] sm:$0x1]
    %61 = vrot.lane.b32.xlu0 %v60, 48
    %v62 = vpop.permute.xlu0 %61
    %vm63 = vcmask 458112
    %64 = vst.msk [vmem:[#allocation0] sm:$0x1] %vm63, %v62
    %s65 = scalar_lea.vmem %s0, 5
    %v66 = vld [vmem:[%s65] sm:$0x1]
    %67 = vrot.lane.b32.xlu0 %v66, 40
    %v68 = vpop.permute.xlu0 %67
    %vm69 = vcmask 392512
    %70 = vst.msk [vmem:[#allocation0] sm:$0x1] %vm69, %v68
    %s71 = scalar_lea.vmem %s0, 4
    %v72 = vld [vmem:[%s71] sm:$0x1]
    %73 = vrot.lane.b32.xlu0 %v72, 32
    %v74 = vpop.permute.xlu0 %73
    %vm75 = vcmask 326912
    %76 = vst.msk [vmem:[#allocation0] sm:$0x1] %vm75, %v74
    %s77 = scalar_lea.vmem %s0, 3
    %v78 = vld [vmem:[%s77] sm:$0x1]
    %79 = vrot.lane.b32.xlu0 %v78, 24
    %v80 = vpop.permute.xlu0 %79
    %vm81 = vcmask 261312
    %82 = vst.msk [vmem:[#allocation0] sm:$0x1] %vm81, %v80
    %s83 = scalar_lea.vmem %s0, 2
    %v84 = vld [vmem:[%s83] sm:$0x1]
    %85 = vrot.lane.b32.xlu0 %v84, 16
    %v86 = vpop.permute.xlu0 %85
    %vm87 = vcmask 195712
    %88 = vst.msk [vmem:[#allocation0] sm:$0x1] %vm87, %v86
    %s89 = scalar_lea.vmem %s0, 1
    %v90 = vld [vmem:[%s89] sm:$0x1]
    %91 = vrot.lane.b32.xlu0 %v90, 8
    %v92 = vpop.permute.xlu0 %91
    %vm93 = vcmask 130112
    %94 = vst.msk [vmem:[#allocation0] sm:$0x1] %vm93, %v92
    %s96 = ssub.s32 2, 1
    %v97 = vld [vmem:[#allocation0] sm:%s96]
    %s99 = ssub.s32 2, 1
    %100 = vst [vmem:[%s1] sm:%s99] %v97

// kernel: down_conv_forward.1
$region0: #{down_conv_forward.1}
  #allocation0 [shape = 'u32[]', space=smem, size = 0x4, offset = 0x4, fixed_abs, tag = 'smem constant byte address 0x4 - core index']
  #allocation1 [shape = 'u32[72,128]{1,0:T(1,128)}', space=vmem, size = 0x9000, scoped, tag = 'internal scratch']
  #allocation2 [shape = 'bf16[2,18,64]{2,1,0:T(8,128)(2,1)}', space=vmem, size = 0x3000, scoped, tag = 'scratch operand']
  #allocation3 [shape = 'bf16[2,18,128]{2,1,0:T(8,128)(2,1)}', space=vmem, size = 0x3000, scoped, tag = 'scratch operand']
  %s0 = inlined_call_operand.vmem [shape: bf16[4,16,64], index: 0, kind: input, shape index: {}]
  %s1 = inlined_call_operand.vmem [shape: bf16[3,64,128], index: 1, kind: input, shape index: {}]
  %s2 = inlined_call_operand.vmem [shape: f32[1,128], index: 2, kind: input, shape index: {}]
  %s3 = inlined_call_operand.vmem [shape: bf16[3,128,128], index: 3, kind: input, shape index: {}]
  %s4 = inlined_call_operand.vmem [shape: f32[1,128], index: 4, kind: input, shape index: {}]
  %s5 = inlined_call_operand.vmem [shape: f32[16,31], index: 5, kind: input, shape index: {}]
  %s6 = inlined_call_operand.vmem [shape: f32[120,128], index: 6, kind: input, shape index: {}]
  %s7 = inlined_call_operand.vmem [shape: f32[4,16,128], index: 7, kind: output, shape index: {0}]
  %s8 = inlined_call_operand.vmem [shape: f32[4,8,128], index: 8, kind: output, shape index: {1}]
  %9 = xla_tuple %s7, %s8
  %s10 = sld [smem:[#allocation0]]
  $region69: #{down_conv_forward.1} parent=0
    _
  %s12 = ssub.s32 1, %s10
  %s13 = scalar_select 0, %s12, %s10
  loop: start=0, step=1, limit=4
  $region2: #{down_conv_forward.1} parent=0 // loop_pre_header
    _
  $region3: #{down_conv_forward.1} parent=0 // loop_header
    %s15 = sphi 0, %s19
    %p16 = scmp.ge.s32.totalorder %s15, 4
    %s25 = sphi 0, %s27
    %s28 = sphi 0, %s25
    %s29 = sphi 0, %s28
    %s45 = sphi 0, %s29
    %s49 = sphi 0, %s49
    %s51 = sphi 0, %s49
    %s52 = sphi 0, %s51
    %s66 = sphi 0, %s52
    %s70 = sphi 0, %s70
    %s72 = sphi 0, %s70
    %s73 = sphi 0, %s72
    %s87 = sphi 0, %s73
    %s91 = sphi 0, %s91
    %s93 = sphi 0, %s91
    %s94 = sphi 0, %s93
    %s108 = sphi 0, %s94
    %s112 = sphi 0, %s112
    %s114 = sphi 0, %s112
    %s115 = sphi 0, %s114
    %s129 = sphi 0, %s115
    %s133 = sphi 0, %s133
    %s135 = sphi 0, %s133
    %s136 = sphi 0, %s135
    %s150 = sphi 0, %s136
    %s154 = sphi 0, %s154
    %s156 = sphi 0, %s154
    %s157 = sphi 0, %s156
    %s171 = sphi 0, %s157
    %s177 = sphi 0, %s179
    %s180 = sphi 0, %s177
    %s181 = sphi 0, %s180
    %s197 = sphi 0, %s181
    %s203 = sphi 0, %s205
    %s206 = sphi 0, %s203
    %s207 = sphi 0, %s206
    %s223 = sphi 0, %s207
  $region4: #{down_conv_forward.1} parent=0 // loop_header_branch
    %18 = sbr.rel (%p16) target = $region8
  $region5: #{down_conv_forward.1} parent=0 // loop_body
    %s20 = ssub.s32 %s15, 1
    %s21 = ssub.s32 %s15, 2
    %s22 = sadd.s32 %s15, 1
    %s23 = ssub.s32 %s15, %s22
    %p24 = scmp.eq.s32.totalorder %s23, 0
    %s26 = sadd.s32 %s25, 1
    %s27 = scalar_select %p24, %s25, %s26
    %p30 = pneg %p24
    %p31 = scmp.eq.s32.totalorder %s15, 1
    %p32 = por %p30, %p31
    %p33 = scmp.ne.s32.totalorder %s25, %s28
    %p34 = scmp.eq.s32.totalorder %s15, 0
    %p35 = por %p33, %p34
    %p36 = scmp.ne.s32.totalorder %s25, %s28
    %p37 = scmp.eq.s32.totalorder %s20, 1
    %p38 = por %p36, %p37
    %p39 = scmp.ne.s32.totalorder %s28, %s29
    %p40 = scmp.eq.s32.totalorder %s20, 0
    %p41 = por %p39, %p40
    %p42 = scmp.ne.s32.totalorder %s28, %s29
    %p43 = scmp.eq.s32.totalorder %s21, 1
    %p44 = por %p42, %p43
    %p46 = scmp.ne.s32.totalorder %s29, %s45
    %p47 = scmp.eq.s32.totalorder %s21, 0
    %p48 = por %p46, %p47
    %s50 = sadd.s32 %s49, 1
    %p53 = scmp.eq.s32.totalorder %s15, 1
    %p54 = scmp.ne.s32.totalorder %s49, %s51
    %p55 = scmp.eq.s32.totalorder %s15, 0
    %p56 = por %p54, %p55
    %p57 = scmp.ne.s32.totalorder %s49, %s51
    %p58 = scmp.eq.s32.totalorder %s20, 1
    %p59 = por %p57, %p58
    %p60 = scmp.ne.s32.totalorder %s51, %s52
    %p61 = scmp.eq.s32.totalorder %s20, 0
    %p62 = por %p60, %p61
    %p63 = scmp.ne.s32.totalorder %s51, %s52
    %p64 = scmp.eq.s32.totalorder %s21, 1
    %p65 = por %p63, %p64
    %p67 = scmp.ne.s32.totalorder %s52, %s66
    %p68 = scmp.eq.s32.totalorder %s21, 0
    %p69 = por %p67, %p68
    %s71 = sadd.s32 %s70, 1
    %p74 = scmp.eq.s32.totalorder %s15, 1
    %p75 = scmp.ne.s32.totalorder %s70, %s72
    %p76 = scmp.eq.s32.totalorder %s15, 0
    %p77 = por %p75, %p76
    %p78 = scmp.ne.s32.totalorder %s70, %s72
    %p79 = scmp.eq.s32.totalorder %s20, 1
    %p80 = por %p78, %p79
    %p81 = scmp.ne.s32.totalorder %s72, %s73
    %p82 = scmp.eq.s32.totalorder %s20, 0
    %p83 = por %p81, %p82
    %p84 = scmp.ne.s32.totalorder %s72, %s73
    %p85 = scmp.eq.s32.totalorder %s21, 1
    %p86 = por %p84, %p85
    %p88 = scmp.ne.s32.totalorder %s73, %s87
    %p89 = scmp.eq.s32.totalorder %s21, 0
    %p90 = por %p88, %p89
    %s92 = sadd.s32 %s91, 1
    %p95 = scmp.eq.s32.totalorder %s15, 1
    %p96 = scmp.ne.s32.totalorder %s91, %s93
    %p97 = scmp.eq.s32.totalorder %s15, 0
    %p98 = por %p96, %p97
    %p99 = scmp.ne.s32.totalorder %s91, %s93
    %p100 = scmp.eq.s32.totalorder %s20, 1
    %p101 = por %p99, %p100
    %p102 = scmp.ne.s32.totalorder %s93, %s94
    %p103 = scmp.eq.s32.totalorder %s20, 0
    %p104 = por %p102, %p103
    %p105 = scmp.ne.s32.totalorder %s93, %s94
    %p106 = scmp.eq.s32.totalorder %s21, 1
    %p107 = por %p105, %p106
    %p109 = scmp.ne.s32.totalorder %s94, %s108
    %p110 = scmp.eq.s32.totalorder %s21, 0
    %p111 = por %p109, %p110
    %s113 = sadd.s32 %s112, 1
    %p116 = scmp.eq.s32.totalorder %s15, 1
    %p117 = scmp.ne.s32.totalorder %s112, %s114
    %p118 = scmp.eq.s32.totalorder %s15, 0
    %p119 = por %p117, %p118
    %p120 = scmp.ne.s32.totalorder %s112, %s114
    %p121 = scmp.eq.s32.totalorder %s20, 1
    %p122 = por %p120, %p121
    %p123 = scmp.ne.s32.totalorder %s114, %s115
    %p124 = scmp.eq.s32.totalorder %s20, 0
    %p125 = por %p123, %p124
    %p126 = scmp.ne.s32.totalorder %s114, %s115
    %p127 = scmp.eq.s32.totalorder %s21, 1
    %p128 = por %p126, %p127
    %p130 = scmp.ne.s32.totalorder %s115, %s129
    %p131 = scmp.eq.s32.totalorder %s21, 0
    %p132 = por %p130, %p131
    %s134 = sadd.s32 %s133, 1
    %p137 = scmp.eq.s32.totalorder %s15, 1
    %p138 = scmp.ne.s32.totalorder %s133, %s135
    %p139 = scmp.eq.s32.totalorder %s15, 0
    %p140 = por %p138, %p139
    %p141 = scmp.ne.s32.totalorder %s133, %s135
    %p142 = scmp.eq.s32.totalorder %s20, 1
    %p143 = por %p141, %p142
    %p144 = scmp.ne.s32.totalorder %s135, %s136
    %p145 = scmp.eq.s32.totalorder %s20, 0
    %p146 = por %p144, %p145
    %p147 = scmp.ne.s32.totalorder %s135, %s136
    %p148 = scmp.eq.s32.totalorder %s21, 1
    %p149 = por %p147, %p148
    %p151 = scmp.ne.s32.totalorder %s136, %s150
    %p152 = scmp.eq.s32.totalorder %s21, 0
    %p153 = por %p151, %p152
    %s155 = sadd.s32 %s154, 1
    %p158 = scmp.eq.s32.totalorder %s15, 1
    %p159 = scmp.ne.s32.totalorder %s154, %s156
    %p160 = scmp.eq.s32.totalorder %s15, 0
    %p161 = por %p159, %p160
    %p162 = scmp.ne.s32.totalorder %s154, %s156
    %p163 = scmp.eq.s32.totalorder %s20, 1
    %p164 = por %p162, %p163
    %p165 = scmp.ne.s32.totalorder %s156, %s157
    %p166 = scmp.eq.s32.totalorder %s20, 0
    %p167 = por %p165, %p166
    %p168 = scmp.ne.s32.totalorder %s156, %s157
    %p169 = scmp.eq.s32.totalorder %s21, 1
    %p170 = por %p168, %p169
    %p172 = scmp.ne.s32.totalorder %s157, %s171
    %p173 = scmp.eq.s32.totalorder %s21, 0
    %p174 = por %p172, %p173
    %s175 = ssub.s32 %s15, %s22
    %p176 = scmp.eq.s32.totalorder %s175, 0
    %s178 = sadd.s32 %s177, 1
    %s179 = scalar_select %p176, %s177, %s178
    %p182 = pneg %p176
    %p183 = scmp.eq.s32.totalorder %s15, 1
    %p184 = por %p182, %p183
    %p185 = scmp.ne.s32.totalorder %s177, %s180
    %p186 = scmp.eq.s32.totalorder %s15, 0
    %p187 = por %p185, %p186
    %p188 = scmp.ne.s32.totalorder %s177, %s180
    %p189 = scmp.eq.s32.totalorder %s20, 1
    %p190 = por %p188, %p189
    %p191 = scmp.ne.s32.totalorder %s180, %s181
    %p192 = scmp.eq.s32.totalorder %s20, 0
    %p193 = por %p191, %p192
    %p194 = scmp.ne.s32.totalorder %s180, %s181
    %p195 = scmp.eq.s32.totalorder %s21, 1
    %p196 = por %p194, %p195
    %p198 = scmp.ne.s32.totalorder %s181, %s197
    %p199 = scmp.eq.s32.totalorder %s21, 0
    %p200 = por %p198, %p199
    %s201 = ssub.s32 %s15, %s22
    %p202 = scmp.eq.s32.totalorder %s201, 0
    %s204 = sadd.s32 %s203, 1
    %s205 = scalar_select %p202, %s203, %s204
    %p208 = pneg %p202
    %p209 = scmp.eq.s32.totalorder %s15, 1
    %p210 = por %p208, %p209
    %p211 = scmp.ne.s32.totalorder %s203, %s206
    %p212 = scmp.eq.s32.totalorder %s15, 0
    %p213 = por %p211, %p212
    %p214 = scmp.ne.s32.totalorder %s203, %s206
    %p215 = scmp.eq.s32.totalorder %s20, 1
    %p216 = por %p214, %p215
    %p217 = scmp.ne.s32.totalorder %s206, %s207
    %p218 = scmp.eq.s32.totalorder %s20, 0
    %p219 = por %p217, %p218
    %p220 = scmp.ne.s32.totalorder %s206, %s207
    %p221 = scmp.eq.s32.totalorder %s21, 1
    %p222 = por %p220, %p221
    %p224 = scmp.ne.s32.totalorder %s207, %s223
    %p225 = scmp.eq.s32.totalorder %s21, 0
    %p226 = por %p224, %p225
    %p227 = scmp.le.s32.totalorder 1, %s15
    %p228 = scmp.lt.s32.totalorder %s15, 3
    %p229 = pnand %p227, %p228
    %p230 = pneg %p229
    // Predicated region
    $region9: #{down_conv_forward.1} parent=5 // pred_check
      _
    $region10: #{down_conv_forward.1} parent=5 // pred_check_branch
      %232 = sbr.rel (%p229) target = $region12
    $region11: #{down_conv_forward.1} parent=5 // pred_region
      %s233 = ssub.s32 %s15, 1
      // Predicated region
      $region13: #{down_conv_forward.1} parent=11 // pred_check
        %p234 = pneg %p62
      $region14: #{down_conv_forward.1} parent=11 // pred_check_branch
        %236 = sbr.rel (%p234) target = $region16
      $region15: #{down_conv_forward.1} parent=11 // pred_region
        _
      $region16: #{down_conv_forward.1} parent=11 // pred_fallthru
        _
      // Predicated region
      $region17: #{down_conv_forward.1} parent=11 // pred_check
        %p237 = pneg %p83
      $region18: #{down_conv_forward.1} parent=11 // pred_check_branch
        %239 = sbr.rel (%p237) target = $region20
      $region19: #{down_conv_forward.1} parent=11 // pred_region
        _
      $region20: #{down_conv_forward.1} parent=11 // pred_fallthru
        _
      // Predicated region
      $region21: #{down_conv_forward.1} parent=11 // pred_check
        %p240 = pneg %p104
      $region22: #{down_conv_forward.1} parent=11 // pred_check_branch
        %242 = sbr.rel (%p240) target = $region24
      $region23: #{down_conv_forward.1} parent=11 // pred_region
        _
      $region24: #{down_conv_forward.1} parent=11 // pred_fallthru
        _
      // Predicated region
      $region25: #{down_conv_forward.1} parent=11 // pred_check
        %p243 = pneg %p125
      $region26: #{down_conv_forward.1} parent=11 // pred_check_branch
        %245 = sbr.rel (%p243) target = $region28
      $region27: #{down_conv_forward.1} parent=11 // pred_region
        _
      $region28: #{down_conv_forward.1} parent=11 // pred_fallthru
        _
      // Predicated region
      $region29: #{down_conv_forward.1} parent=11 // pred_check
        %p246 = pneg %p146
      $region30: #{down_conv_forward.1} parent=11 // pred_check_branch
        %248 = sbr.rel (%p246) target = $region32
      $region31: #{down_conv_forward.1} parent=11 // pred_region
        _
      $region32: #{down_conv_forward.1} parent=11 // pred_fallthru
        _
      // Predicated region
      $region33: #{down_conv_forward.1} parent=11 // pred_check
        %p249 = pneg %p167
      $region34: #{down_conv_forward.1} parent=11 // pred_check_branch
        %251 = sbr.rel (%p249) target = $region36
      $region35: #{down_conv_forward.1} parent=11 // pred_region
        _
      $region36: #{down_conv_forward.1} parent=11 // pred_fallthru
        _
    $region12: #{down_conv_forward.1} parent=5 // pred_fallthru
      _
    %p252 = scmp.lt.s32.totalorder %s15, 2
    // Predicated region
    $region37: #{down_conv_forward.1} parent=5 // pred_check
      %p253 = pneg %p252
    $region38: #{down_conv_forward.1} parent=5 // pred_check_branch
      %255 = sbr.rel (%p253) target = $region40
    $region39: #{down_conv_forward.1} parent=5 // pred_region
      // Predicated region
      $region41: #{down_conv_forward.1} parent=39 // pred_check
        %p256 = pneg %p35
      $region42: #{down_conv_forward.1} parent=39 // pred_check_branch
        %258 = sbr.rel (%p256) target = $region44
      $region43: #{down_conv_forward.1} parent=39 // pred_region
        %s259 = smul.u32 2, %s15
        %p260 = scmp.lt.s32.totalorder %s259, 3
        %s261 = scalar_select %p260, %s259, 3
        %s262 = smul.addr %s261, 2
        %s263 = smul.addr %s262, 4
        %s264 = scalar_lea.vmem %s0, %s263
        %s265 = smul.u32 2, %s15
      $region44: #{down_conv_forward.1} parent=39 // pred_fallthru
        _
    $region40: #{down_conv_forward.1} parent=5 // pred_fallthru
      _
    %p266 = scmp.le.s32.totalorder 1, %s15
    %p267 = scmp.lt.s32.totalorder %s15, 3
    %p268 = pnand %p266, %p267
    %p269 = pneg %p268
    // Predicated region
    $region45: #{down_conv_forward.1} parent=5 // pred_check
      _
    $region46: #{down_conv_forward.1} parent=5 // pred_check_branch
      %271 = sbr.rel (%p268) target = $region48
    $region47: #{down_conv_forward.1} parent=5 // pred_region
      %s272 = ssub.s32 %s15, 1
      %s273 = smul.u32 2, %s20
      %p274 = scmp.lt.s32.totalorder %s273, 3
      %s275 = scalar_select %p274, %s273, 3
      %s276 = smul.addr %s275, 2
      %s277 = smul.addr %s276, 4
      %s278 = scalar_lea.vmem %s0, %s277
      %p279 = pneg %p41
      %p280 = pneg %p38
      %p281 = pneg %p62
      %p282 = pneg %p59
      %p283 = pneg %p83
      %p284 = pneg %p80
      %p285 = pneg %p104
      %p286 = pneg %p101
      %p287 = pneg %p125
      %p288 = pneg %p122
      %p289 = pneg %p146
      %p290 = pneg %p143
      %p291 = pneg %p167
      %p292 = pneg %p164
      %p293 = pneg %p193
      %p294 = pneg %p190
      %s295 = smul.u32 2, %s20
      %p296 = scmp.lt.s32.totalorder %s295, 3
      %s297 = scalar_select %p296, %s295, 3
      %s298 = smul.addr %s297, 2
      %s299 = smul.addr %s298, 8
      %s300 = scalar_lea.vmem %s7, %s299
      %p301 = pneg %p219
      %p302 = pneg %p216
      %s303 = smul.u32 2, %s20
      %p304 = scmp.lt.s32.totalorder %s303, 3
      %s305 = scalar_select %p304, %s303, 3
      %s306 = smul.addr %s305, 8
      %s307 = scalar_lea.vmem %s8, %s306
      %s308 = smul.u32 2, %s20
      %p309 = scmp.lt.s32.totalorder %s308, 3
      %s310 = scalar_select %p309, %s308, 3
      %s311 = smul.addr %s310, 2
      %s312 = smul.addr %s311, 4
      %s313 = scalar_lea.vmem %s0, %s312
      %s314 = smul.u32 2, %s20
      %s315 = smul.u32 2, %s20
      %p316 = scmp.lt.s32.totalorder %s315, 3
      %s317 = scalar_select %p316, %s315, 3
      %s318 = smul.addr %s317, 2
      %s319 = smul.addr %s318, 8
      %s320 = scalar_lea.vmem %s7, %s319
      %s321 = smul.u32 2, %s20
      %s322 = smul.u32 2, %s20
      %p323 = scmp.lt.s32.totalorder %s322, 3
      %s324 = scalar_select %p323, %s322, 3
      %s325 = smul.addr %s324, 8
      %s326 = scalar_lea.vmem %s8, %s325
      %s327 = smul.u32 2, %s20
      %vm329 = vcmask 516096
      %vm330 = vsmask.f32 256
      %vm331 = vmand %vm329, %vm330
      %v332 = vld [vmem:[#allocation2] sm:$0x1]
      %v333 = vsel %vm331, 0, %v332
      %334 = vst [vmem:[#allocation2] sm:$0x1] %v333
      %v335 = vld [vmem:[#allocation2 + $0xc] sm:$0x1]
      %v336 = vsel %vm331, 0, %v335
      %337 = vst [vmem:[#allocation2 + $0xc] sm:$0x1] %v336
      %vm338 = vsmask.f32 7938
      %vm339 = vmand %vm329, %vm338
      %v340 = vld [vmem:[#allocation2 + $0x8] sm:$0x1]
      %v341 = vsel %vm339, 0, %v340
      %342 = vst [vmem:[#allocation2 + $0x8] sm:$0x1] %v341
      %v343 = vld [vmem:[#allocation2 + $0x14] sm:$0x1]
      %v344 = vsel %vm339, 0, %v343
      %345 = vst [vmem:[#allocation2 + $0x14] sm:$0x1] %v344
      %v346 = vld [vmem:[%s313] sm:$0xf]
      %v347 = vld [vmem:[%s313 + $0x4] sm:$0xf]
      %v348 = vld [vmem:[%s313 + $0x8] sm:$0xf]
      %v349 = vld [vmem:[%s313 + $0xc] sm:$0xf]
      %vm350 = vsmask.f32 4368
      %vm351 = vmor %vm330, %vm350
      %v353 = vshrl.u32 %v346, 16
      %v355 = vrot.slane %v353, 7
      %v356 = vshll.u32 %v346, 16
      %v358 = vor.u32 %v355, %v356
      %v359 = vrot.slane %v355, 4
      %v361 = vshrl.u32 %v347, 16
      %v363 = vrot.slane %v361, 7
      %v364 = vshll.u32 %v347, 16
      %v366 = vor.u32 %v363, %v364
      %v367 = vsel %vm351, %v359, %v366
      %v368 = vrot.slane %v363, 4
      %v370 = vshrl.u32 %v348, 16
      %v372 = vrot.slane %v370, 7
      %v373 = vshll.u32 %v348, 16
      %v375 = vor.u32 %v372, %v373
      %v376 = vrot.slane %v372, 4
      %v378 = vshrl.u32 %v349, 16
      %v380 = vrot.slane %v378, 7
      %v381 = vshll.u32 %v349, 16
      %v383 = vor.u32 %v380, %v381
      %v384 = vsel %vm351, %v376, %v383
      %v385 = vrot.slane %v380, 4
      %vm392 = vcmask 519168
      %vm393 = vmand %vm392, %vm338
      %v394 = vld [vmem:[#allocation2] sm:$0xf]
      %v395 = vsel %vm393, %v358, %v394
      %396 = vst [vmem:[#allocation2] sm:$0xf] %v395
      %vm397 = vcmask 519168
      %398 = vst.msk [vmem:[#allocation2 + $0x4] sm:$0xf] %vm397, %v367
      %v399 = vld [vmem:[#allocation2 + $0x8] sm:$0x1]
      %v400 = vsel %vm331, %v368, %v399
      %401 = vst [vmem:[#allocation2 + $0x8] sm:$0x1] %v400
      %v402 = vld [vmem:[#allocation2 + $0xc] sm:$0xf]
      %v403 = vsel %vm393, %v375, %v402
      %404 = vst [vmem:[#allocation2 + $0xc] sm:$0xf] %v403
      %405 = vst.msk [vmem:[#allocation2 + $0x10] sm:$0xf] %vm397, %v384
      %v406 = vld [vmem:[#allocation2 + $0x14] sm:$0x1]
      %v407 = vsel %vm331, %v385, %v406
      %408 = vst [vmem:[#allocation2 + $0x14] sm:$0x1] %v407
      %v409 = vld [vmem:[#allocation2] sm:$0xf]
      %v410 = vld [vmem:[#allocation2 + $0x4] sm:$0xf]
      %v411 = vld [vmem:[#allocation2 + $0xc] sm:$0xf]
      %v412 = vld [vmem:[#allocation2 + $0x10] sm:$0xf]
      %v413 = vld [vmem:[%s1] sm:$0xf]
      %v414 = vld [vmem:[%s1 + $0x4] sm:$0xf]
      %v415 = vld [vmem:[%s1 + $0x8] sm:$0xf]
      %v416 = vld [vmem:[%s1 + $0xc] sm:$0xf]
      %v417 = vld [vmem:[%s1 + $0x10] sm:$0xf]
      %v418 = vld [vmem:[%s1 + $0x14] sm:$0xf]
      %v419 = vld [vmem:[%s1 + $0x18] sm:$0xf]
      %v420 = vld [vmem:[%s1 + $0x1c] sm:$0xf]
      %v421 = vld [vmem:[#allocation2 + $0x8] sm:$0x1]
      %v422 = vld [vmem:[#allocation2 + $0x14] sm:$0x1]
      %vm423 = vsmask.f32 3328
      %vm424 = vsmask.f32 7440
      %vm425 = vmor %vm423, %vm424
      %v427 = vshrl.u32 %v409, 16
      %v429 = vrot.slane %v427, 4
      %v430 = vshll.u32 %v409, 16
      %v432 = vrot.slane %v430, 5
      %v433 = vor.u32 %v429, %v432
      %v434 = vrot.slane %v433, 4
      %v436 = vshll.u32 %v410, 16
      %v438 = vrot.slane %v436, 5
      %v439 = vsel %vm425, %v434, %v438
      %v440 = vshrl.u32 %v410, 16
      %v442 = vrot.slane %v440, 4
      %v443 = vor.u32 %v442, %v438
      %v444 = vrot.slane %v443, 4
      %v446 = vshll.u32 %v421, 16
      %v448 = vrot.slane %v446, 5
      %v449 = vsel %vm425, %v444, %v448
      %v451 = vshrl.u32 %v411, 16
      %v453 = vrot.slane %v451, 4
      %v454 = vshll.u32 %v411, 16
      %v456 = vrot.slane %v454, 5
      %v457 = vor.u32 %v453, %v456
      %v458 = vrot.slane %v457, 4
      %v460 = vshll.u32 %v412, 16
      %v462 = vrot.slane %v460, 5
      %v463 = vsel %vm425, %v458, %v462
      %v464 = vshrl.u32 %v412, 16
      %v466 = vrot.slane %v464, 4
      %v467 = vor.u32 %v466, %v462
      %v468 = vrot.slane %v467, 4
      %v470 = vshll.u32 %v422, 16
      %v472 = vrot.slane %v470, 5
      %v473 = vsel %vm425, %v468, %v472
      %s474 = scalar_lea.vmem %s1, 32
      %v475 = vld [vmem:[%s474] sm:$0xf]
      %v476 = vld [vmem:[%s474 + $0x4] sm:$0xf]
      %v477 = vld [vmem:[%s474 + $0x8] sm:$0xf]
      %v478 = vld [vmem:[%s474 + $0xc] sm:$0xf]
      %v479 = vld [vmem:[%s474 + $0x10] sm:$0xf]
      %v480 = vld [vmem:[%s474 + $0x14] sm:$0xf]
      %v481 = vld [vmem:[%s474 + $0x18] sm:$0xf]
      %v482 = vld [vmem:[%s474 + $0x1c] sm:$0xf]
      %v483 = vunpack.c.l.b16 %v439
      %v484 = vunpack.c.l.b16 %v449
      %v485 = vunpack.c.l.b16 %v463
      %v486 = vunpack.c.l.b16 %v473
      %v487 = vpack.c.b16 %v484, %v483
      %v488 = vpack.c.b16 %v486, %v485
      %v497 = vunpack.c.l.b16 %v475
      %v498 = vunpack.c.l.b16 %v476
      %v499 = vunpack.c.l.b16 %v477
      %v500 = vunpack.c.l.b16 %v478
      %v501 = vunpack.c.l.b16 %v479
      %v502 = vunpack.c.l.b16 %v480
      %v503 = vunpack.c.l.b16 %v481
      %v504 = vunpack.c.l.b16 %v482
      %v505 = vpack.c.b16 %v498, %v497
      %v506 = vpack.c.b16 %v500, %v499
      %v507 = vpack.c.b16 %v502, %v501
      %v508 = vpack.c.b16 %v504, %v503
      %vm513 = vcmask 523264
      %v515 = vsel %vm513, %v487, 0
      %v518 = vsel %vm513, %v488, 0
      %520 = vmatpush.bf16.msra.mxu0 0
      %521 = vmatpush.bf16.msra.mxu0 0
      %522 = vmatpush.bf16.msra.mxu0 0
      %523 = vmatpush.bf16.msra.mxu0 0
      %524 = vmatpush.bf16.msra.mxu0 %v508
      %525 = vmatpush.bf16.msra.mxu0 %v507
      %526 = vmatpush.bf16.msra.mxu0 %v506
      %527 = vmatpush.bf16.msra.mxu0 %v505
      %528 = vmatmul.bf16.gmra.mxu0 %v515
      %v529 = vpop.f32.mrf.mxu0
      %v530 = vadd.f32 0.0, %v529
      %v531 = vpop.f32.mrf.mxu0
      %v532 = vadd.f32 0.0, %v531
      %533 = vmatmul.bf16.gmra.mxu0 %v518
      %v534 = vpop.f32.mrf.mxu0
      %v535 = vadd.f32 0.0, %v534
      %v536 = vpop.f32.mrf.mxu0
      %v537 = vadd.f32 0.0, %v536
      %538 = vdwg.mxu0
      %v543 = vunpack.c.l.b16 %v409
      %v544 = vunpack.c.l.b16 %v410
      %v545 = vunpack.c.l.b16 %v411
      %v546 = vunpack.c.l.b16 %v412
      %v547 = vpack.c.b16 %v544, %v543
      %v548 = vpack.c.b16 %v546, %v545
      %v557 = vunpack.c.l.b16 %v413
      %v558 = vunpack.c.l.b16 %v414
      %v559 = vunpack.c.l.b16 %v415
      %v560 = vunpack.c.l.b16 %v416
      %v561 = vunpack.c.l.b16 %v417
      %v562 = vunpack.c.l.b16 %v418
      %v563 = vunpack.c.l.b16 %v419
      %v564 = vunpack.c.l.b16 %v420
      %v565 = vpack.c.b16 %v558, %v557
      %v566 = vpack.c.b16 %v560, %v559
      %v567 = vpack.c.b16 %v562, %v561
      %v568 = vpack.c.b16 %v564, %v563
      %v574 = vsel %vm513, %v547, 0
      %v577 = vsel %vm513, %v548, 0
      %579 = vmatpush.bf16.msra.mxu0 0
      %580 = vmatpush.bf16.msra.mxu0 0
      %581 = vmatpush.bf16.msra.mxu0 0
      %582 = vmatpush.bf16.msra.mxu0 0
      %583 = vmatpush.bf16.msra.mxu0 %v568
      %584 = vmatpush.bf16.msra.mxu0 %v567
      %585 = vmatpush.bf16.msra.mxu0 %v566
      %586 = vmatpush.bf16.msra.mxu0 %v565
      %587 = vmatmul.bf16.gmra.mxu0 %v574
      %v588 = vpop.f32.mrf.mxu0
      %v589 = vadd.f32 %v530, %v588
      %v590 = vpop.f32.mrf.mxu0
      %v591 = vadd.f32 %v532, %v590
      %592 = vmatmul.bf16.gmra.mxu0 %v577
      %v593 = vpop.f32.mrf.mxu0
      %v594 = vadd.f32 %v535, %v593
      %v595 = vpop.f32.mrf.mxu0
      %v596 = vadd.f32 %v537, %v595
      %597 = vdwg.mxu0
      %v598 = vld [vmem:[#allocation2] sm:$0xe]
      %v599 = vld [vmem:[#allocation2 + $0xc] sm:$0xe]
      %vm604 = vcmask 1042432
      %vm605 = vcmask 1046532
      %vm606 = vmor %vm604, %vm605
      %v607 = vrot.slane %v598, 5
      %v608 = vrot.slane %v607, 4
      %v609 = vrot.slane %v410, 5
      %v610 = vsel %vm606, %v608, %v609
      %v611 = vrot.slane %v609, 4
      %v612 = vrot.slane %v421, 5
      %v613 = vsel %vm606, %v611, %v612
      %v614 = vrot.slane %v599, 5
      %v615 = vrot.slane %v614, 4
      %v616 = vrot.slane %v412, 5
      %v617 = vsel %vm606, %v615, %v616
      %v618 = vrot.slane %v616, 4
      %v619 = vrot.slane %v422, 5
      %v620 = vsel %vm606, %v618, %v619
      %s621 = scalar_lea.vmem %s1, 64
      %v622 = vld [vmem:[%s621] sm:$0xf]
      %v623 = vld [vmem:[%s621 + $0x4] sm:$0xf]
      %v624 = vld [vmem:[%s621 + $0x8] sm:$0xf]
      %v625 = vld [vmem:[%s621 + $0xc] sm:$0xf]
      %v626 = vld [vmem:[%s621 + $0x10] sm:$0xf]
      %v627 = vld [vmem:[%s621 + $0x14] sm:$0xf]
      %v628 = vld [vmem:[%s621 + $0x18] sm:$0xf]
      %v629 = vld [vmem:[%s621 + $0x1c] sm:$0xf]
      %v630 = vunpack.c.l.b16 %v610
      %v631 = vunpack.c.l.b16 %v613
      %v632 = vunpack.c.l.b16 %v617
      %v633 = vunpack.c.l.b16 %v620
      %v634 = vpack.c.b16 %v631, %v630
      %v635 = vpack.c.b16 %v633, %v632
      %v644 = vunpack.c.l.b16 %v622
      %v645 = vunpack.c.l.b16 %v623
      %v646 = vunpack.c.l.b16 %v624
      %v647 = vunpack.c.l.b16 %v625
      %v648 = vunpack.c.l.b16 %v626
      %v649 = vunpack.c.l.b16 %v627
      %v650 = vunpack.c.l.b16 %v628
      %v651 = vunpack.c.l.b16 %v629
      %v652 = vpack.c.b16 %v645, %v644
      %v653 = vpack.c.b16 %v647, %v646
      %v654 = vpack.c.b16 %v649, %v648
      %v655 = vpack.c.b16 %v651, %v650
      %v661 = vsel %vm513, %v634, 0
      %v664 = vsel %vm513, %v635, 0
      %666 = vmatpush.bf16.msra.mxu0 0
      %667 = vmatpush.bf16.msra.mxu0 0
      %668 = vmatpush.bf16.msra.mxu0 0
      %669 = vmatpush.bf16.msra.mxu0 0
      %670 = vmatpush.bf16.msra.mxu0 %v655
      %671 = vmatpush.bf16.msra.mxu0 %v654
      %672 = vmatpush.bf16.msra.mxu0 %v653
      %673 = vmatpush.bf16.msra.mxu0 %v652
      %674 = vmatmul.bf16.gmra.mxu0 %v661
      %v675 = vpop.f32.mrf.mxu0
      %v676 = vadd.f32 0.0, %v675
      %v677 = vpop.f32.mrf.mxu0
      %v678 = vadd.f32 0.0, %v677
      %679 = vmatmul.bf16.gmra.mxu0 %v664
      %v680 = vpop.f32.mrf.mxu0
      %v681 = vadd.f32 0.0, %v680
      %v682 = vpop.f32.mrf.mxu0
      %v683 = vadd.f32 0.0, %v682
      %684 = vdwg.mxu0
      %v685 = vadd.f32 %v589, %v676
      %v686 = vadd.f32 %v591, %v678
      %v687 = vadd.f32 %v594, %v681
      %v688 = vadd.f32 %v596, %v683
      %v689 = vld [vmem:[%s2] sm:$0x1]
      %v691 = vperm.slane %v689, 0
      %v693 = vadd.f32 %v685, %v691
      %v694 = vadd.f32 %v686, %v691
      %v695 = vadd.f32 %v687, %v691
      %v696 = vadd.f32 %v688, %v691
      %v697 = vmax.f32 %v693, 0.0
      %v698 = vmax.f32 %v694, 0.0
      %v699 = vmax.f32 %v695, 0.0
      %v700 = vmax.f32 %v696, 0.0
      %vm701 = vcmask 1040384
      %vm702 = vmand %vm701, %vm330
      %v703 = vld [vmem:[#allocation3] sm:$0x1]
      %v704 = vsel %vm702, 0, %v703
      %705 = vst [vmem:[#allocation3] sm:$0x1] %v704
      %v706 = vld [vmem:[#allocation3 + $0xc] sm:$0x1]
      %v707 = vsel %vm702, 0, %v706
      %708 = vst [vmem:[#allocation3 + $0xc] sm:$0x1] %v707
      %vm709 = vmand %vm701, %vm338
      %v710 = vld [vmem:[#allocation3 + $0x8] sm:$0x1]
      %v711 = vsel %vm709, 0, %v710
      %712 = vst [vmem:[#allocation3 + $0x8] sm:$0x1] %v711
      %v713 = vld [vmem:[#allocation3 + $0x14] sm:$0x1]
      %v714 = vsel %vm709, 0, %v713
      %715 = vst [vmem:[#allocation3 + $0x14] sm:$0x1] %v714
      %v716 = vpack.c.bf16 %v697, %v697
      %v717 = vpack.c.bf16 %v698, %v698
      %v718 = vpack.c.bf16 %v699, %v699
      %v719 = vpack.c.bf16 %v700, %v700
      %v721 = vshrl.u32 %v716, 16
      %v723 = vrot.slane %v721, 7
      %v724 = vshll.u32 %v716, 16
      %v726 = vor.u32 %v723, %v724
      %v727 = vrot.slane %v723, 4
      %v729 = vshrl.u32 %v717, 16
      %v731 = vrot.slane %v729, 7
      %v732 = vshll.u32 %v717, 16
      %v734 = vor.u32 %v731, %v732
      %v735 = vsel %vm351, %v727, %v734
      %v736 = vrot.slane %v731, 4
      %v738 = vshrl.u32 %v718, 16
      %v740 = vrot.slane %v738, 7
      %v741 = vshll.u32 %v718, 16
      %v743 = vor.u32 %v740, %v741
      %v744 = vrot.slane %v740, 4
      %v746 = vshrl.u32 %v719, 16
      %v748 = vrot.slane %v746, 7
      %v749 = vshll.u32 %v719, 16
      %v751 = vor.u32 %v748, %v749
      %v752 = vsel %vm351, %v744, %v751
      %v753 = vrot.slane %v748, 4
      %vm760 = vcmask 1043456
      %vm761 = vmand %vm760, %vm338
      %v762 = vld [vmem:[#allocation3] sm:$0xf]
      %v763 = vsel %vm761, %v726, %v762
      %764 = vst [vmem:[#allocation3] sm:$0xf] %v763
      %765 = vst [vmem:[#allocation3 + $0x4] sm:$0xf] %v735
      %v766 = vld [vmem:[#allocation3 + $0x8] sm:$0x1]
      %v767 = vsel %vm702, %v736, %v766
      %768 = vst [vmem:[#allocation3 + $0x8] sm:$0x1] %v767
      %v769 = vld [vmem:[#allocation3 + $0xc] sm:$0xf]
      %v770 = vsel %vm761, %v743, %v769
      %771 = vst [vmem:[#allocation3 + $0xc] sm:$0xf] %v770
      %772 = vst [vmem:[#allocation3 + $0x10] sm:$0xf] %v752
      %v773 = vld [vmem:[#allocation3 + $0x14] sm:$0x1]
      %v774 = vsel %vm702, %v753, %v773
      %775 = vst [vmem:[#allocation3 + $0x14] sm:$0x1] %v774
      %v776 = vld [vmem:[#allocation3] sm:$0xf]
      %v777 = vld [vmem:[#allocation3 + $0x4] sm:$0xf]
      %v778 = vld [vmem:[#allocation3 + $0xc] sm:$0xf]
      %v779 = vld [vmem:[#allocation3 + $0x10] sm:$0xf]
      %v780 = vld [vmem:[%s3] sm:$0xf]
      %v781 = vld [vmem:[%s3 + $0x4] sm:$0xf]
      %v782 = vld [vmem:[%s3 + $0x8] sm:$0xf]
      %v783 = vld [vmem:[%s3 + $0xc] sm:$0xf]
      %v784 = vld [vmem:[%s3 + $0x10] sm:$0xf]
      %v785 = vld [vmem:[%s3 + $0x14] sm:$0xf]
      %v786 = vld [vmem:[%s3 + $0x18] sm:$0xf]
      %v787 = vld [vmem:[%s3 + $0x1c] sm:$0xf]
      %v788 = vld [vmem:[%s3 + $0x20] sm:$0xf]
      %v789 = vld [vmem:[%s3 + $0x24] sm:$0xf]
      %v790 = vld [vmem:[%s3 + $0x28] sm:$0xf]
      %v791 = vld [vmem:[%s3 + $0x2c] sm:$0xf]
      %v792 = vld [vmem:[%s3 + $0x30] sm:$0xf]
      %v793 = vld [vmem:[%s3 + $0x34] sm:$0xf]
      %v794 = vld [vmem:[%s3 + $0x38] sm:$0xf]
      %v795 = vld [vmem:[%s3 + $0x3c] sm:$0xf]
      %v796 = vld [vmem:[#allocation3 + $0x8] sm:$0x1]
      %v797 = vld [vmem:[#allocation3 + $0x14] sm:$0x1]
      %v799 = vshrl.u32 %v776, 16
      %v801 = vrot.slane %v799, 4
      %v802 = vshll.u32 %v776, 16
      %v804 = vrot.slane %v802, 5
      %v805 = vor.u32 %v801, %v804
      %v806 = vrot.slane %v805, 4
      %v808 = vshll.u32 %v777, 16
      %v810 = vrot.slane %v808, 5
      %v811 = vsel %vm425, %v806, %v810
      %v812 = vshrl.u32 %v777, 16
      %v814 = vrot.slane %v812, 4
      %v815 = vor.u32 %v814, %v810
      %v816 = vrot.slane %v815, 4
      %v818 = vshll.u32 %v796, 16
      %v820 = vrot.slane %v818, 5
      %v821 = vsel %vm425, %v816, %v820
      %v823 = vshrl.u32 %v778, 16
      %v825 = vrot.slane %v823, 4
      %v826 = vshll.u32 %v778, 16
      %v828 = vrot.slane %v826, 5
      %v829 = vor.u32 %v825, %v828
      %v830 = vrot.slane %v829, 4
      %v832 = vshll.u32 %v779, 16
      %v834 = vrot.slane %v832, 5
      %v835 = vsel %vm425, %v830, %v834
      %v836 = vshrl.u32 %v779, 16
      %v838 = vrot.slane %v836, 4
      %v839 = vor.u32 %v838, %v834
      %v840 = vrot.slane %v839, 4
      %v842 = vshll.u32 %v797, 16
      %v844 = vrot.slane %v842, 5
      %v845 = vsel %vm425, %v840, %v844
      %s846 = scalar_lea.vmem %s3, 64
      %v847 = vld [vmem:[%s846] sm:$0xf]
      %v848 = vld [vmem:[%s846 + $0x4] sm:$0xf]
      %v849 = vld [vmem:[%s846 + $0x8] sm:$0xf]
      %v850 = vld [vmem:[%s846 + $0xc] sm:$0xf]
      %v851 = vld [vmem:[%s846 + $0x10] sm:$0xf]
      %v852 = vld [vmem:[%s846 + $0x14] sm:$0xf]
      %v853 = vld [vmem:[%s846 + $0x18] sm:$0xf]
      %v854 = vld [vmem:[%s846 + $0x1c] sm:$0xf]
      %v855 = vld [vmem:[%s846 + $0x20] sm:$0xf]
      %v856 = vld [vmem:[%s846 + $0x24] sm:$0xf]
      %v857 = vld [vmem:[%s846 + $0x28] sm:$0xf]
      %v858 = vld [vmem:[%s846 + $0x2c] sm:$0xf]
      %v859 = vld [vmem:[%s846 + $0x30] sm:$0xf]
      %v860 = vld [vmem:[%s846 + $0x34] sm:$0xf]
      %v861 = vld [vmem:[%s846 + $0x38] sm:$0xf]
      %v862 = vld [vmem:[%s846 + $0x3c] sm:$0xf]
      %v863 = vunpack.c.l.b16 %v811
      %v864 = vunpack.c.l.b16 %v821
      %v865 = vunpack.c.l.b16 %v835
      %v866 = vunpack.c.l.b16 %v845
      %v867 = vpack.c.b16 %v864, %v863
      %v868 = vpack.c.b16 %v866, %v865
      %v887 = vunpack.c.l.b16 %v847
      %v888 = vunpack.c.l.b16 %v848
      %v889 = vunpack.c.l.b16 %v849
      %v890 = vunpack.c.l.b16 %v850
      %v891 = vunpack.c.l.b16 %v851
      %v892 = vunpack.c.l.b16 %v852
      %v893 = vunpack.c.l.b16 %v853
      %v894 = vunpack.c.l.b16 %v854
      %v895 = vunpack.c.l.b16 %v855
      %v896 = vunpack.c.l.b16 %v856
      %v897 = vunpack.c.l.b16 %v857
      %v898 = vunpack.c.l.b16 %v858
      %v899 = vunpack.c.l.b16 %v859
      %v900 = vunpack.c.l.b16 %v860
      %v901 = vunpack.c.l.b16 %v861
      %v902 = vunpack.c.l.b16 %v862
      %v903 = vpack.c.b16 %v888, %v887
      %v904 = vpack.c.b16 %v890, %v889
      %v905 = vpack.c.b16 %v892, %v891
      %v906 = vpack.c.b16 %v894, %v893
      %v907 = vpack.c.b16 %v896, %v895
      %v908 = vpack.c.b16 %v898, %v897
      %v909 = vpack.c.b16 %v900, %v899
      %v910 = vpack.c.b16 %v902, %v901
      %919 = vmatpush.bf16.msra.mxu0 %v910
      %920 = vmatpush.bf16.msra.mxu0 %v909
      %921 = vmatpush.bf16.msra.mxu0 %v908
      %922 = vmatpush.bf16.msra.mxu0 %v907
      %923 = vmatpush.bf16.msra.mxu0 %v906
      %924 = vmatpush.bf16.msra.mxu0 %v905
      %925 = vmatpush.bf16.msra.mxu0 %v904
      %926 = vmatpush.bf16.msra.mxu0 %v903
      %927 = vmatmul.bf16.gmra.mxu0 %v867
      %v928 = vpop.f32.mrf.mxu0
      %v929 = vadd.f32 0.0, %v928
      %v930 = vpop.f32.mrf.mxu0
      %v931 = vadd.f32 0.0, %v930
      %932 = vmatmul.bf16.gmra.mxu0 %v868
      %v933 = vpop.f32.mrf.mxu0
      %v934 = vadd.f32 0.0, %v933
      %v935 = vpop.f32.mrf.mxu0
      %v936 = vadd.f32 0.0, %v935
      %937 = vdwg.mxu0
      %v942 = vunpack.c.l.b16 %v776
      %v943 = vunpack.c.l.b16 %v777
      %v944 = vunpack.c.l.b16 %v778
      %v945 = vunpack.c.l.b16 %v779
      %v946 = vpack.c.b16 %v943, %v942
      %v947 = vpack.c.b16 %v945, %v944
      %v966 = vunpack.c.l.b16 %v780
      %v967 = vunpack.c.l.b16 %v781
      %v968 = vunpack.c.l.b16 %v782
      %v969 = vunpack.c.l.b16 %v783
      %v970 = vunpack.c.l.b16 %v784
      %v971 = vunpack.c.l.b16 %v785
      %v972 = vunpack.c.l.b16 %v786
      %v973 = vunpack.c.l.b16 %v787
      %v974 = vunpack.c.l.b16 %v788
      %v975 = vunpack.c.l.b16 %v789
      %v976 = vunpack.c.l.b16 %v790
      %v977 = vunpack.c.l.b16 %v791
      %v978 = vunpack.c.l.b16 %v792
      %v979 = vunpack.c.l.b16 %v793
      %v980 = vunpack.c.l.b16 %v794
      %v981 = vunpack.c.l.b16 %v795
      %v982 = vpack.c.b16 %v967, %v966
      %v983 = vpack.c.b16 %v969, %v968
      %v984 = vpack.c.b16 %v971, %v970
      %v985 = vpack.c.b16 %v973, %v972
      %v986 = vpack.c.b16 %v975, %v974
      %v987 = vpack.c.b16 %v977, %v976
      %v988 = vpack.c.b16 %v979, %v978
      %v989 = vpack.c.b16 %v981, %v980
      %998 = vmatpush.bf16.msra.mxu0 %v989
      %999 = vmatpush.bf16.msra.mxu0 %v988
      %1000 = vmatpush.bf16.msra.mxu0 %v987
      %1001 = vmatpush.bf16.msra.mxu0 %v986
      %1002 = vmatpush.bf16.msra.mxu0 %v985
      %1003 = vmatpush.bf16.msra.mxu0 %v984
      %1004 = vmatpush.bf16.msra.mxu0 %v983
      %1005 = vmatpush.bf16.msra.mxu0 %v982
      %1006 = vmatmul.bf16.gmra.mxu0 %v946
      %v1007 = vpop.f32.mrf.mxu0
      %v1008 = vadd.f32 %v929, %v1007
      %v1009 = vpop.f32.mrf.mxu0
      %v1010 = vadd.f32 %v931, %v1009
      %1011 = vmatmul.bf16.gmra.mxu0 %v947
      %v1012 = vpop.f32.mrf.mxu0
      %v1013 = vadd.f32 %v934, %v1012
      %v1014 = vpop.f32.mrf.mxu0
      %v1015 = vadd.f32 %v936, %v1014
      %1016 = vdwg.mxu0
      %v1017 = vld [vmem:[#allocation3] sm:$0xe]
      %v1018 = vld [vmem:[#allocation3 + $0xc] sm:$0xe]
      %v1023 = vrot.slane %v1017, 5
      %v1024 = vrot.slane %v1023, 4
      %v1025 = vrot.slane %v777, 5
      %v1026 = vsel %vm606, %v1024, %v1025
      %v1027 = vrot.slane %v1025, 4
      %v1028 = vrot.slane %v796, 5
      %v1029 = vsel %vm606, %v1027, %v1028
      %v1030 = vrot.slane %v1018, 5
      %v1031 = vrot.slane %v1030, 4
      %v1032 = vrot.slane %v779, 5
      %v1033 = vsel %vm606, %v1031, %v1032
      %v1034 = vrot.slane %v1032, 4
      %v1035 = vrot.slane %v797, 5
      %v1036 = vsel %vm606, %v1034, %v1035
      %s1037 = scalar_lea.vmem %s3, 128
      %v1038 = vld [vmem:[%s1037] sm:$0xf]
      %v1039 = vld [vmem:[%s1037 + $0x4] sm:$0xf]
      %v1040 = vld [vmem:[%s1037 + $0x8] sm:$0xf]
      %v1041 = vld [vmem:[%s1037 + $0xc] sm:$0xf]
      %v1042 = vld [vmem:[%s1037 + $0x10] sm:$0xf]
      %v1043 = vld [vmem:[%s1037 + $0x14] sm:$0xf]
      %v1044 = vld [vmem:[%s1037 + $0x18] sm:$0xf]
      %v1045 = vld [vmem:[%s1037 + $0x1c] sm:$0xf]
      %v1046 = vld [vmem:[%s1037 + $0x20] sm:$0xf]
      %v1047 = vld [vmem:[%s1037 + $0x24] sm:$0xf]
      %v1048 = vld [vmem:[%s1037 + $0x28] sm:$0xf]
      %v1049 = vld [vmem:[%s1037 + $0x2c] sm:$0xf]
      %v1050 = vld [vmem:[%s1037 + $0x30] sm:$0xf]
      %v1051 = vld [vmem:[%s1037 + $0x34] sm:$0xf]
      %v1052 = vld [vmem:[%s1037 + $0x38] sm:$0xf]
      %v1053 = vld [vmem:[%s1037 + $0x3c] sm:$0xf]
      %v1054 = vunpack.c.l.b16 %v1026
      %v1055 = vunpack.c.l.b16 %v1029
      %v1056 = vunpack.c.l.b16 %v1033
      %v1057 = vunpack.c.l.b16 %v1036
      %v1058 = vpack.c.b16 %v1055, %v1054
      %v1059 = vpack.c.b16 %v1057, %v1056
      %v1078 = vunpack.c.l.b16 %v1038
      %v1079 = vunpack.c.l.b16 %v1039
      %v1080 = vunpack.c.l.b16 %v1040
      %v1081 = vunpack.c.l.b16 %v1041
      %v1082 = vunpack.c.l.b16 %v1042
      %v1083 = vunpack.c.l.b16 %v1043
      %v1084 = vunpack.c.l.b16 %v1044
      %v1085 = vunpack.c.l.b16 %v1045
      %v1086 = vunpack.c.l.b16 %v1046
      %v1087 = vunpack.c.l.b16 %v1047
      %v1088 = vunpack.c.l.b16 %v1048
      %v1089 = vunpack.c.l.b16 %v1049
      %v1090 = vunpack.c.l.b16 %v1050
      %v1091 = vunpack.c.l.b16 %v1051
      %v1092 = vunpack.c.l.b16 %v1052
      %v1093 = vunpack.c.l.b16 %v1053
      %v1094 = vpack.c.b16 %v1079, %v1078
      %v1095 = vpack.c.b16 %v1081, %v1080
      %v1096 = vpack.c.b16 %v1083, %v1082
      %v1097 = vpack.c.b16 %v1085, %v1084
      %v1098 = vpack.c.b16 %v1087, %v1086
      %v1099 = vpack.c.b16 %v1089, %v1088
      %v1100 = vpack.c.b16 %v1091, %v1090
      %v1101 = vpack.c.b16 %v1093, %v1092
      %1110 = vmatpush.bf16.msra.mxu0 %v1101
      %1111 = vmatpush.bf16.msra.mxu0 %v1100
      %1112 = vmatpush.bf16.msra.mxu0 %v1099
      %1113 = vmatpush.bf16.msra.mxu0 %v1098
      %1114 = vmatpush.bf16.msra.mxu0 %v1097
      %1115 = vmatpush.bf16.msra.mxu0 %v1096
      %1116 = vmatpush.bf16.msra.mxu0 %v1095
      %1117 = vmatpush.bf16.msra.mxu0 %v1094
      %1118 = vmatmul.bf16.gmra.mxu0 %v1058
      %v1119 = vpop.f32.mrf.mxu0
      %v1120 = vadd.f32 0.0, %v1119
      %v1121 = vpop.f32.mrf.mxu0
      %v1122 = vadd.f32 0.0, %v1121
      %1123 = vmatmul.bf16.gmra.mxu0 %v1059
      %v1124 = vpop.f32.mrf.mxu0
      %v1125 = vadd.f32 0.0, %v1124
      %v1126 = vpop.f32.mrf.mxu0
      %v1127 = vadd.f32 0.0, %v1126
      %1128 = vdwg.mxu0
      %v1129 = vadd.f32 %v1008, %v1120
      %v1130 = vadd.f32 %v1010, %v1122
      %v1131 = vadd.f32 %v1013, %v1125
      %v1132 = vadd.f32 %v1015, %v1127
      %v1133 = vld [vmem:[%s4] sm:$0x1]
      %v1135 = vperm.slane %v1133, 0
      %v1137 = vadd.f32 %v1129, %v1135
      %v1138 = vadd.f32 %v1130, %v1135
      %v1139 = vadd.f32 %v1131, %v1135
      %v1140 = vadd.f32 %v1132, %v1135
      %v1141 = vmax.f32 %v1137, 0.0
      %v1142 = vmax.f32 %v1138, 0.0
      %v1143 = vmax.f32 %v1139, 0.0
      %v1144 = vmax.f32 %v1140, 0.0
      %1145 = vst [vmem:[%s320] sm:$0xff] %v1141
      %1146 = vst [vmem:[%s320 + $0x8] sm:$0xff] %v1142
      %1147 = vst [vmem:[%s320 + $0x10] sm:$0xff] %v1143
      %1148 = vst [vmem:[%s320 + $0x18] sm:$0xff] %v1144
      %vm1153 = vcmask 1046528
      %v1154 = vrot.slane %v1141, 1
      %v1155 = vrot.slane %v1142, 1
      %v1156 = vsel %vm1153, %v1154, %v1155
      %v1157 = vrot.slane %v1143, 1
      %v1158 = vsel %vm1153, %v1155, %v1157
      %v1159 = vrot.slane %v1144, 1
      %v1160 = vsel %vm1153, %v1157, %v1159
      %v1165 = vmax.f32 %v1141, %v1156
      %v1166 = vmax.f32 %v1142, %v1158
      %v1167 = vmax.f32 %v1143, %v1160
      %v1168 = vmax.f32 %v1144, %v1159
      %v1169 = vld [vmem:[%s5] sm:$0xff]
      %v1170 = vld [vmem:[%s5 + $0x8] sm:$0xff]
      %vm1171 = vcmask 252928
      %v1173 = vsel %vm1171, %v1169, 0
      %v1176 = vsel %vm1171, %v1170, 0
      %v1179 = vsel %vm1153, %v1168, 0
      %1181 = vmatpush.msra.mxu0 0.0
      %1182 = vmatpush.msra.mxu0 0.0
      %1183 = vmatpush.msra.mxu0 0.0
      %1184 = vmatpush.msra.mxu0 0.0
      %1185 = vmatpush.msra.mxu0 0.0
      %1186 = vmatpush.msra.mxu0 0.0
      %1187 = vmatpush.msra.mxu0 0.0
      %1188 = vmatpush.msra.mxu0 0.0
      %1189 = vmatpush.msra.mxu0 0.0
      %1190 = vmatpush.msra.mxu0 0.0
      %1191 = vmatpush.msra.mxu0 0.0
      %1192 = vmatpush.msra.mxu0 0.0
      %1193 = vmatpush.msra.mxu0 %v1179
      %1194 = vmatpush.msra.mxu0 %v1167
      %1195 = vmatpush.msra.mxu0 %v1166
      %1196 = vmatpush.msra.mxu0 %v1165
      %1197 = vmatmul.f32.gmra.mxu0 %v1173
      %v1198 = vpop.f32.mrf.mxu0
      %v1199 = vadd.f32 0.0, %v1198
      %1200 = vmatmul.f32.gmra.mxu0 %v1176
      %v1201 = vpop.f32.mrf.mxu0
      %v1202 = vadd.f32 0.0, %v1201
      %1203 = vdwg.mxu0
      %1206 = vrot.lane.b32.xlu0 %v1199, 120
      %v1207 = vpop.permute.xlu0 %1206
      %1208 = vrot.lane.b32.xlu0 %v1202, 120
      %v1209 = vpop.permute.xlu0 %1208
      %v1212 = vmax.f32 %v1199, %v1207
      %v1213 = vmax.f32 %v1202, %v1209
      %v1214 = vld [vmem:[%s6] sm:$0xff]
      %v1215 = vld [vmem:[%s6 + $0x8] sm:$0xff]
      %v1216 = vld [vmem:[%s6 + $0x10] sm:$0xff]
      %v1217 = vld [vmem:[%s6 + $0x18] sm:$0xff]
      %v1218 = vld [vmem:[%s6 + $0x20] sm:$0xff]
      %v1219 = vld [vmem:[%s6 + $0x28] sm:$0xff]
      %v1220 = vld [vmem:[%s6 + $0x30] sm:$0xff]
      %v1221 = vld [vmem:[%s6 + $0x38] sm:$0xff]
      %v1222 = vld [vmem:[%s6 + $0x40] sm:$0xff]
      %v1223 = vld [vmem:[%s6 + $0x48] sm:$0xff]
      %v1224 = vld [vmem:[%s6 + $0x50] sm:$0xff]
      %v1225 = vld [vmem:[%s6 + $0x58] sm:$0xff]
      %v1226 = vld [vmem:[%s6 + $0x60] sm:$0xff]
      %v1227 = vld [vmem:[%s6 + $0x68] sm:$0xff]
      %v1228 = vld [vmem:[%s6 + $0x70] sm:$0xff]
      %vm1229 = vcmask 982016
      %v1231 = vsel %vm1229, %v1212, 0
      %v1234 = vsel %vm1229, %v1213, 0
      %1236 = vmatpush.msra.mxu0 0.0
      %1237 = vmatpush.msra.mxu0 %v1228
      %1238 = vmatpush.msra.mxu0 %v1227
      %1239 = vmatpush.msra.mxu0 %v1226
      %1240 = vmatpush.msra.mxu0 %v1225
      %1241 = vmatpush.msra.mxu0 %v1224
      %1242 = vmatpush.msra.mxu0 %v1223
      %1243 = vmatpush.msra.mxu0 %v1222
      %1244 = vmatpush.msra.mxu0 %v1221
      %1245 = vmatpush.msra.mxu0 %v1220
      %1246 = vmatpush.msra.mxu0 %v1219
      %1247 = vmatpush.msra.mxu0 %v1218
      %1248 = vmatpush.msra.mxu0 %v1217
      %1249 = vmatpush.msra.mxu0 %v1216
      %1250 = vmatpush.msra.mxu0 %v1215
      %1251 = vmatpush.msra.mxu0 %v1214
      %1252 = vmatmul.f32.gmra.mxu0 %v1231
      %v1253 = vpop.f32.mrf.mxu0
      %v1254 = vadd.f32 0.0, %v1253
      %1255 = vmatmul.f32.gmra.mxu0 %v1234
      %v1256 = vpop.f32.mrf.mxu0
      %v1257 = vadd.f32 0.0, %v1256
      %1258 = vdwg.mxu0
      %1259 = vst [vmem:[%s326] sm:$0xff] %v1254
      %1260 = vst [vmem:[%s326 + $0x8] sm:$0xff] %v1257
      %s1261 = smul.u32 2, %s20
      %p1262 = scmp.lt.s32.totalorder %s1261, 3
      %s1263 = scalar_select %p1262, %s1261, 3
      %s1264 = smul.addr %s1263, 2
      %s1265 = smul.addr %s1264, 8
      %s1266 = scalar_lea.vmem %s7, %s1265
      %s1267 = smul.u32 2, %s20
      %p1268 = scmp.lt.s32.totalorder %s1267, 3
      %s1269 = scalar_select %p1268, %s1267, 3
      %s1270 = smul.addr %s1269, 8
      %s1271 = scalar_lea.vmem %s8, %s1270
      // Predicated region
      $region49: #{down_conv_forward.1} parent=47 // pred_check
        %p1272 = pneg %p190
      $region50: #{down_conv_forward.1} parent=47 // pred_check_branch
        %1274 = sbr.rel (%p1272) target = $region52
      $region51: #{down_conv_forward.1} parent=47 // pred_region
        %s1275 = smul.u32 2, %s20
      $region52: #{down_conv_forward.1} parent=47 // pred_fallthru
        _
      // Predicated region
      $region53: #{down_conv_forward.1} parent=47 // pred_check
        %p1276 = pneg %p216
      $region54: #{down_conv_forward.1} parent=47 // pred_check_branch
        %1278 = sbr.rel (%p1276) target = $region56
      $region55: #{down_conv_forward.1} parent=47 // pred_region
        %s1279 = smul.u32 2, %s20
      $region56: #{down_conv_forward.1} parent=47 // pred_fallthru
        _
    $region48: #{down_conv_forward.1} parent=5 // pred_fallthru
      _
    %p1280 = scmp.le.s32.totalorder 2, %s15
    // Predicated region
    $region57: #{down_conv_forward.1} parent=5 // pred_check
      %p1281 = pneg %p1280
    $region58: #{down_conv_forward.1} parent=5 // pred_check_branch
      %1283 = sbr.rel (%p1281) target = $region60
    $region59: #{down_conv_forward.1} parent=5 // pred_region
      %s1284 = ssub.s32 %s15, 2
      // Predicated region
      $region61: #{down_conv_forward.1} parent=59 // pred_check
        %p1285 = pneg %p196
      $region62: #{down_conv_forward.1} parent=59 // pred_check_branch
        %1287 = sbr.rel (%p1285) target = $region64
      $region63: #{down_conv_forward.1} parent=59 // pred_region
        %s1288 = smul.u32 2, %s21
        %p1289 = scmp.lt.s32.totalorder %s1288, 3
        %s1290 = scalar_select %p1289, %s1288, 3
        %s1291 = smul.addr %s1290, 2
        %s1292 = smul.addr %s1291, 8
        %s1293 = scalar_lea.vmem %s7, %s1292
      $region64: #{down_conv_forward.1} parent=59 // pred_fallthru
        _
      // Predicated region
      $region65: #{down_conv_forward.1} parent=59 // pred_check
        %p1294 = pneg %p222
      $region66: #{down_conv_forward.1} parent=59 // pred_check_branch
        %1296 = sbr.rel (%p1294) target = $region68
      $region67: #{down_conv_forward.1} parent=59 // pred_region
        %s1297 = smul.u32 2, %s21
        %p1298 = scmp.lt.s32.totalorder %s1297, 3
        %s1299 = scalar_select %p1298, %s1297, 3
        %s1300 = smul.addr %s1299, 8
        %s1301 = scalar_lea.vmem %s8, %s1300
      $region68: #{down_conv_forward.1} parent=59 // pred_fallthru
        _
    $region60: #{down_conv_forward.1} parent=5 // pred_fallthru
      _
  $region6: #{down_conv_forward.1} parent=0 // loop_footer
    %s19 = sadd.s32 1, %s15
  $region7: #{down_conv_forward.1} parent=0 // loop_footer_branch
    %14 = sbr.rel target = $region3
  $region8: #{down_conv_forward.1} parent=0 // loop_exit
    _

</llo_original>
